<compile_context>
chip_gen: v6e
topology: v6e:2x2x1
jax: 0.10.0
libtpu: 0.0.40
codegen_flags: <defaults>
</compile_context>

<pallas_src>
import math
import jax
import jax.numpy as jnp
from jax.experimental import pallas as pl
from jax.experimental.pallas import tpu as pltpu


# ----------------------------------------------------------------------------
# Config (small, consistent with LMTAD_Quantum_Config fields)
# ----------------------------------------------------------------------------
VOCAB = 64            # vocab_size
VPAD = 128            # vocab padded to one full 128-lane tile (lane-dense store)
BLOCK = 16            # block_size
N_LAYER = 2           # n_layer
N_EMBD = 32           # n_embd
N_HID = 4 * N_EMBD    # MLP hidden = 128
BATCH = 2
SEQLEN = 8
BT = BATCH * SEQLEN   # 16 rows

# ---- packed weight-slab row offsets (all multiples of 8: aligned slices) ----
OFF_WTE = 0                                   # (VOCAB, D) tok embedding (tied)
OFF_WPE = OFF_WTE + VOCAB                     # (BLOCK, D) pos embedding
OFF_LN_G = OFF_WPE + BLOCK                    # (1, D)  ln_f weight
OFF_WKM = tuple(OFF_LN_G + 8 + 16 * l for l in range(N_LAYER))   # (1, D) mean-col(Wk^T)
OFF_BV = tuple(OFF_LN_G + 16 + 16 * l for l in range(N_LAYER))   # (1, D) v_proj bias
OFF_WLM = OFF_LN_G + 8 + 16 * N_LAYER         # (D, VPAD) tied lm_head, vocab-padded
_LAYER0 = OFF_WLM + N_EMBD
_LSTRIDE = 2 * N_EMBD + N_HID                 # wv(32) + wfc(32) + wproj(128) rows
OFF_WV = tuple(_LAYER0 + _LSTRIDE * l for l in range(N_LAYER))            # (D, D)
OFF_WFC = tuple(_LAYER0 + _LSTRIDE * l + N_EMBD for l in range(N_LAYER))  # (D, 4D)
OFF_WPR = tuple(_LAYER0 + _LSTRIDE * l + 2 * N_EMBD for l in range(N_LAYER))  # (4D, D)
R_TOTAL = _LAYER0 + _LSTRIDE * N_LAYER        # 536 rows -> ~268 KiB f32 slab


def _gelu_exact(x):
    # nn.GELU() default = exact erf formulation
    return 0.5 * x * (1.0 + jax.lax.erf(x * (1.0 / math.sqrt(2.0))))


# ----------------------------------------------------------------------------
# Fused Pallas kernel: embedding + N_LAYER QET blocks + ln_f + tied lm_head
# ----------------------------------------------------------------------------
def lmtad_fused_kernel(idx_ref, bkm_ref, w_ref, o_ref):
    """idx_ref: (BT,) int32 in SMEM; bkm_ref: (N_LAYER,) f32 in SMEM;
       w_ref: (R_TOTAL, 128) f32 packed weight slab in VMEM;
       o_ref: (BT, VPAD) f32 lane-dense logits."""
    D, H, T, B = N_EMBD, N_HID, SEQLEN, BATCH
    f32 = jnp.float32

    # ---- embedding: exact 0/1 "two-hot" gather on the MXU ---------------------
    # Row r selects column idx[r] (token row of wte) AND column VOCAB + r%T
    # (position row of wpe) from the contiguous [wte; wpe] slab region, so
    # tok_emb + pos_emb is produced by a single (BT, 80) @ (80, D) matmul.
    rid = jax.lax.broadcasted_iota(jnp.int32, (BT, 1), 0)
    idx_col = jnp.zeros((BT, 1), jnp.int32)
    for r in range(BT):                                   # BT=16 unrolled selects
        idx_col = jnp.where(rid == r, idx_ref[r], idx_col)
    pos_col = (rid % T) + VOCAB
    lane = jax.lax.broadcasted_iota(jnp.int32, (BT, VOCAB + BLOCK), 1)
    sel = jnp.logical_or(lane == idx_col, lane == pos_col).astype(f32)
    emb_tbl = w_ref[OFF_WTE:OFF_WPE + BLOCK, 0:D]         # (80, D) = [wte; wpe]
    x = jnp.dot(sel, emb_tbl, preferred_element_type=f32)  # (BT, D); dropout p=0

    # ---- layer 0: quantum attention over all BT rows -------------------------
    wkm = w_ref[OFF_WKM[0]:OFF_WKM[0] + 1, 0:D]           # (1, D) mean-col(Wk^T)
    wv = w_ref[OFF_WV[0]:OFF_WV[0] + D, 0:D]              # (D, D)
    bv = w_ref[OFF_BV[0]:OFF_BV[0] + 1, 0:D]              # (1, D)
    k_mean = jnp.sum(x * wkm, axis=-1, keepdims=True) + bkm_ref[0]   # (BT, 1)
    # scores = cos(k_mean) in [-1, 1] -> exp stable without a max-subtraction
    e = jnp.exp(jnp.cos(k_mean))                          # (BT, 1)
    v = jnp.dot(x, wv, preferred_element_type=f32) + bv   # (BT, D)
    # per-batch softmax-weighted sum of V via sublane reshape-reduces (no tiny
    # MXU segment matmuls; XLU slot instead of MXU push/pop round trips)
    num = jnp.sum((e * v).reshape(B, T, D), axis=1)       # (B, D)
    den = jnp.sum(e.reshape(B, T, 1), axis=1)             # (B, 1)
    y = num / den                                         # (B, D) exact division

    wfc = w_ref[OFF_WFC[0]:OFF_WFC[0] + D, :]             # (D, 4D) lane dense
    wpr = w_ref[OFF_WPR[0]:OFF_WPR[0] + H, 0:D]           # (4D, D)
    y = jnp.dot(_gelu_exact(jnp.dot(y, wfc, preferred_element_type=f32)),
                wpr, preferred_element_type=f32)          # (B, D)

    # ---- layers >= 1: rows within a batch are identical, so the scores are
    # identical, softmax is exactly uniform and attention output == V(row).
    # Stay on the B distinct rows (exact, T=8x less work). -----------------------
    for l in range(1, N_LAYER):
        wv = w_ref[OFF_WV[l]:OFF_WV[l] + D, 0:D]
        bv = w_ref[OFF_BV[l]:OFF_BV[l] + 1, 0:D]
        wfc = w_ref[OFF_WFC[l]:OFF_WFC[l] + D, :]
        wpr = w_ref[OFF_WPR[l]:OFF_WPR[l] + H, 0:D]
        v = jnp.dot(y, wv, preferred_element_type=f32) + bv
        y = jnp.dot(_gelu_exact(jnp.dot(v, wfc, preferred_element_type=f32)),
                    wpr, preferred_element_type=f32)      # (B, D)

    # ---- ln_f (no bias) + tied, vocab-padded lm_head on the B distinct rows ---
    ln_g = w_ref[OFF_LN_G:OFF_LN_G + 1, 0:D]
    mu = jnp.mean(y, axis=-1, keepdims=True)
    xc = y - mu
    var = jnp.mean(xc * xc, axis=-1, keepdims=True)
    xn = xc * jax.lax.rsqrt(var + 1e-5) * ln_g
    wlm = w_ref[OFF_WLM:OFF_WLM + D, :]                   # (D, VPAD)
    logits_b = jnp.dot(xn, wlm, preferred_element_type=f32)   # (B, VPAD)

    # ---- broadcast each batch's row to its T identical rows; each store is one
    # full, aligned, unmasked (8, 128) tile (lane-dense output). ----------------
    for b in range(B):
        o_ref[b * T:(b + 1) * T, :] = jnp.broadcast_to(
            logits_b[b:b + 1, :], (T, VPAD))


def lmtad_fused(idx_flat, bk_means, w_slab):
    # honest (tiny) cost estimate so XLA does not over-serialize around the call
    flops = (2 * BT * (VOCAB + BLOCK) * N_EMBD            # embedding two-hot matmul
             + 2 * BT * N_EMBD * N_EMBD                   # layer-0 V projection
             + N_LAYER * (2 * BATCH * N_EMBD * N_EMBD     # per-layer V (B rows)
                          + 4 * BATCH * N_EMBD * N_HID)   # MLP fc + proj (B rows)
             + 2 * BATCH * N_EMBD * VPAD)                 # lm_head (B rows)
    trans = 2 * BT + N_LAYER * BATCH * N_HID              # cos/exp + erf
    nbytes = 4 * (int(w_slab.size) + int(idx_flat.size) + int(bk_means.size)
                  + BT * VPAD)

    return pl.pallas_call(
        lmtad_fused_kernel,
        out_shape=jax.ShapeDtypeStruct((BT, VPAD), jnp.float32),
        grid_spec=pltpu.PrefetchScalarGridSpec(
            num_scalar_prefetch=0,
            grid=(1,),                                    # single step, one TC
            in_specs=[
                pl.BlockSpec(memory_space=pltpu.MemorySpace.SMEM),   # idx (BT,)
                pl.BlockSpec(memory_space=pltpu.MemorySpace.SMEM),   # bk_means
                pl.BlockSpec((R_TOTAL, VPAD), lambda i: (0, 0)),     # weight slab
            ],
            out_specs=pl.BlockSpec((BT, VPAD), lambda i: (0, 0)),
        ),
        compiler_params=pltpu.CompilerParams(
            dimension_semantics=("arbitrary",)),          # no cross-TC split
        cost_estimate=pl.CostEstimate(flops=int(flops),
                                      transcendentals=int(trans),
                                      bytes_accessed=int(nbytes)),
    )(idx_flat, bk_means, w_slab)


# ----------------------------------------------------------------------------
# Parameter init (deterministic, matches shapes / init scheme of __init__)
# ----------------------------------------------------------------------------
def init_params(key):
    D, H = N_EMBD, N_HID
    std = 0.02
    proj_std = 0.02 / math.sqrt(2 * N_LAYER)
    keys = jax.random.split(key, 2 + 4 * N_LAYER)
    ki = iter(keys)

    wte = std * jax.random.normal(next(ki), (VOCAB, D), jnp.float32)  # tied lm_head
    wpe = std * jax.random.normal(next(ki), (BLOCK, D), jnp.float32)
    ln_g = jnp.ones((D,), jnp.float32)                                # ln_f weight

    blocks = []
    for _ in range(N_LAYER):
        wk = std * jax.random.normal(next(ki), (D, D), jnp.float32)   # (out, in)
        bk = jnp.zeros((D,), jnp.float32)                             # Linear bias -> 0
        wv = std * jax.random.normal(next(ki), (D, D), jnp.float32)
        bv = jnp.zeros((D,), jnp.float32)
        # q_proj params exist in the torch module but provably never affect the
        # output (<ZZ> = cos(k_mean), independent of Q) -- not materialized.
        wfc = std * jax.random.normal(next(ki), (H, D), jnp.float32)       # c_fc
        wproj = proj_std * jax.random.normal(next(ki), (D, H), jnp.float32)  # c_proj
        blocks.append(dict(wk_t=wk.T, bk=bk, wv_t=wv.T, bv=bv,
                           wfc_t=wfc.T, wproj_t=wproj.T))

    # ---- pack everything the kernel needs into ONE lane-dense (R, 128) slab ---
    W = jnp.zeros((R_TOTAL, VPAD), jnp.float32)
    W = W.at[OFF_WTE:OFF_WTE + VOCAB, :D].set(wte)
    W = W.at[OFF_WPE:OFF_WPE + BLOCK, :D].set(wpe)
    W = W.at[OFF_LN_G, :D].set(ln_g)
    W = W.at[OFF_WLM:OFF_WLM + D, :VOCAB].set(wte.T)        # tied head, vocab-padded
    bk_means = []
    for l, blk in enumerate(blocks):
        W = W.at[OFF_WKM[l], :D].set(jnp.mean(blk["wk_t"], axis=1))  # K folded to matvec
        W = W.at[OFF_BV[l], :D].set(blk["bv"])
        W = W.at[OFF_WV[l]:OFF_WV[l] + D, :D].set(blk["wv_t"])
        W = W.at[OFF_WFC[l]:OFF_WFC[l] + D, :].set(blk["wfc_t"])
        W = W.at[OFF_WPR[l]:OFF_WPR[l] + H, :D].set(blk["wproj_t"])
        bk_means.append(jnp.mean(blk["bk"]))
    bk_means = jnp.stack(bk_means).astype(jnp.float32)      # (N_LAYER,) SMEM scalars

    return dict(wte=wte, wpe=wpe, ln_g=ln_g, blocks=blocks,
                W=W, bk_means=bk_means)


# ----------------------------------------------------------------------------
# Model forward: the whole forward pass is ONE Pallas call
# ----------------------------------------------------------------------------
@jax.jit
def forward_pallas(idx, params):
    b, t = idx.shape
    assert t <= BLOCK and b * t == BT
    idx_flat = idx.reshape(BT).astype(jnp.int32)
    logits_pad = lmtad_fused(idx_flat, params["bk_means"], params["W"])  # (BT, VPAD)
    return logits_pad[:, :VOCAB].reshape(b, t, VOCAB)       # loss path: targets=None
    # TODO(synk): cross-entropy loss path (targets != None) not implemented.


# Pure-JAX reference (full per-row math, un-shortcut) for the correctness check.
def forward_ref(idx, params):
    b, t = idx.shape
    x = jnp.take(params["wte"], idx, axis=0) + params["wpe"][:t][None]
    for blk in params["blocks"]:
        k = x @ blk["wk_t"] + blk["bk"]                     # (B, T, D)
        v = x @ blk["wv_t"] + blk["bv"]
        k_mean = jnp.mean(k, axis=-1)                       # (B, T)
        scores = jnp.broadcast_to(jnp.cos(k_mean)[:, None, :], (b, t, t))
        w = jax.nn.softmax(scores, axis=-1)
        attn = jnp.einsum("bij,bjd->bid", w, v)             # (B, T, D)
        h = _gelu_exact(attn @ blk["wfc_t"])
        x = h @ blk["wproj_t"]
    mu = jnp.mean(x, axis=-1, keepdims=True)
    xc = x - mu
    var = jnp.mean(xc * xc, axis=-1, keepdims=True)
    xn = xc * jax.lax.rsqrt(var + 1e-5) * params["ln_g"]
    return xn @ params["wte"].T


if __name__ == "__main__":
    key = jax.random.PRNGKey(0)
    pkey, ikey = jax.random.split(key)
    params = init_params(pkey)
    idx = jax.random.randint(ikey, (BATCH, SEQLEN), 0, VOCAB, dtype=jnp.int32)

    logits = jax.block_until_ready(forward_pallas(idx, params))
    assert logits.shape == (BATCH, SEQLEN, VOCAB)
    assert logits.dtype == jnp.float32

    ref = jax.block_until_ready(forward_ref(idx, params))
    assert jnp.allclose(logits, ref, atol=1e-4, rtol=1e-4), "mismatch vs reference"

    print("KERNEL_OK")
</pallas_src>

<mosaic_0001>
module attributes {stable_mosaic.version = 11 : i64} {
  func.func @lmtad_fused_kernel(%arg0: i32, %arg1: memref<16xi32, #tpu.memory_space<smem>>, %arg2: memref<2xf32, #tpu.memory_space<smem>>, %arg3: memref<536x128xf32, #tpu.memory_space<vmem>>, %arg4: memref<16x128xf32, #tpu.memory_space<vmem>>) attributes {dimension_semantics = [#tpu.dimension_semantics<arbitrary>], iteration_bounds = array<i64: 1>, scalar_prefetch = 0 : i64, scratch_operands = 0 : i64, tpu.core_type = #tpu.core_type<tc>, window_params = [{transform_indices = @transform_0, window_bounds = array<i64: 16>}, {transform_indices = @transform_1, window_bounds = array<i64: 2>}, {pipeline_mode = #tpu.pipeline_mode<synchronous>, transform_indices = @transform_2, window_bounds = array<i64: 536, 128>}, {pipeline_mode = #tpu.pipeline_mode<synchronous>, transform_indices = @transform_3, window_bounds = array<i64: 16, 128>}]} {
    %0 = tpu.iota {dimensions = array<i32: 0>} : vector<16x1xi32>
    %c0_i32 = arith.constant 0 : i32
    %1 = vector.broadcast %c0_i32 : i32 to vector<16x1xi32>
    %c0_i32_0 = arith.constant 0 : i32
    %2 = vector.broadcast %c0_i32_0 : i32 to vector<16x1xi32>
    %3 = arith.cmpi eq, %0, %2 : vector<16x1xi32>
    %c0 = arith.constant 0 : index
    %4 = memref.load %arg1[%c0] : memref<16xi32, #tpu.memory_space<smem>>
    %5 = vector.broadcast %4 : i32 to vector<16x1xi32>
    %6 = arith.select %3, %5, %1 : vector<16x1xi1>, vector<16x1xi32>
    %c1_i32 = arith.constant 1 : i32
    %7 = vector.broadcast %c1_i32 : i32 to vector<16x1xi32>
    %8 = arith.cmpi eq, %0, %7 : vector<16x1xi32>
    %c1 = arith.constant 1 : index
    %9 = memref.load %arg1[%c1] : memref<16xi32, #tpu.memory_space<smem>>
    %10 = vector.broadcast %9 : i32 to vector<16x1xi32>
    %11 = arith.select %8, %10, %6 : vector<16x1xi1>, vector<16x1xi32>
    %c2_i32 = arith.constant 2 : i32
    %12 = vector.broadcast %c2_i32 : i32 to vector<16x1xi32>
    %13 = arith.cmpi eq, %0, %12 : vector<16x1xi32>
    %c2 = arith.constant 2 : index
    %14 = memref.load %arg1[%c2] : memref<16xi32, #tpu.memory_space<smem>>
    %15 = vector.broadcast %14 : i32 to vector<16x1xi32>
    %16 = arith.select %13, %15, %11 : vector<16x1xi1>, vector<16x1xi32>
    %c3_i32 = arith.constant 3 : i32
    %17 = vector.broadcast %c3_i32 : i32 to vector<16x1xi32>
    %18 = arith.cmpi eq, %0, %17 : vector<16x1xi32>
    %c3 = arith.constant 3 : index
    %19 = memref.load %arg1[%c3] : memref<16xi32, #tpu.memory_space<smem>>
    %20 = vector.broadcast %19 : i32 to vector<16x1xi32>
    %21 = arith.select %18, %20, %16 : vector<16x1xi1>, vector<16x1xi32>
    %c4_i32 = arith.constant 4 : i32
    %22 = vector.broadcast %c4_i32 : i32 to vector<16x1xi32>
    %23 = arith.cmpi eq, %0, %22 : vector<16x1xi32>
    %c4 = arith.constant 4 : index
    %24 = memref.load %arg1[%c4] : memref<16xi32, #tpu.memory_space<smem>>
    %25 = vector.broadcast %24 : i32 to vector<16x1xi32>
    %26 = arith.select %23, %25, %21 : vector<16x1xi1>, vector<16x1xi32>
    %c5_i32 = arith.constant 5 : i32
    %27 = vector.broadcast %c5_i32 : i32 to vector<16x1xi32>
    %28 = arith.cmpi eq, %0, %27 : vector<16x1xi32>
    %c5 = arith.constant 5 : index
    %29 = memref.load %arg1[%c5] : memref<16xi32, #tpu.memory_space<smem>>
    %30 = vector.broadcast %29 : i32 to vector<16x1xi32>
    %31 = arith.select %28, %30, %26 : vector<16x1xi1>, vector<16x1xi32>
    %c6_i32 = arith.constant 6 : i32
    %32 = vector.broadcast %c6_i32 : i32 to vector<16x1xi32>
    %33 = arith.cmpi eq, %0, %32 : vector<16x1xi32>
    %c6 = arith.constant 6 : index
    %34 = memref.load %arg1[%c6] : memref<16xi32, #tpu.memory_space<smem>>
    %35 = vector.broadcast %34 : i32 to vector<16x1xi32>
    %36 = arith.select %33, %35, %31 : vector<16x1xi1>, vector<16x1xi32>
    %c7_i32 = arith.constant 7 : i32
    %37 = vector.broadcast %c7_i32 : i32 to vector<16x1xi32>
    %38 = arith.cmpi eq, %0, %37 : vector<16x1xi32>
    %c7 = arith.constant 7 : index
    %39 = memref.load %arg1[%c7] : memref<16xi32, #tpu.memory_space<smem>>
    %40 = vector.broadcast %39 : i32 to vector<16x1xi32>
    %41 = arith.select %38, %40, %36 : vector<16x1xi1>, vector<16x1xi32>
    %c8_i32 = arith.constant 8 : i32
    %42 = vector.broadcast %c8_i32 : i32 to vector<16x1xi32>
    %43 = arith.cmpi eq, %0, %42 : vector<16x1xi32>
    %c8 = arith.constant 8 : index
    %44 = memref.load %arg1[%c8] : memref<16xi32, #tpu.memory_space<smem>>
    %45 = vector.broadcast %44 : i32 to vector<16x1xi32>
    %46 = arith.select %43, %45, %41 : vector<16x1xi1>, vector<16x1xi32>
    %c9_i32 = arith.constant 9 : i32
    %47 = vector.broadcast %c9_i32 : i32 to vector<16x1xi32>
    %48 = arith.cmpi eq, %0, %47 : vector<16x1xi32>
    %c9 = arith.constant 9 : index
    %49 = memref.load %arg1[%c9] : memref<16xi32, #tpu.memory_space<smem>>
    %50 = vector.broadcast %49 : i32 to vector<16x1xi32>
    %51 = arith.select %48, %50, %46 : vector<16x1xi1>, vector<16x1xi32>
    %c10_i32 = arith.constant 10 : i32
    %52 = vector.broadcast %c10_i32 : i32 to vector<16x1xi32>
    %53 = arith.cmpi eq, %0, %52 : vector<16x1xi32>
    %c10 = arith.constant 10 : index
    %54 = memref.load %arg1[%c10] : memref<16xi32, #tpu.memory_space<smem>>
    %55 = vector.broadcast %54 : i32 to vector<16x1xi32>
    %56 = arith.select %53, %55, %51 : vector<16x1xi1>, vector<16x1xi32>
    %c11_i32 = arith.constant 11 : i32
    %57 = vector.broadcast %c11_i32 : i32 to vector<16x1xi32>
    %58 = arith.cmpi eq, %0, %57 : vector<16x1xi32>
    %c11 = arith.constant 11 : index
    %59 = memref.load %arg1[%c11] : memref<16xi32, #tpu.memory_space<smem>>
    %60 = vector.broadcast %59 : i32 to vector<16x1xi32>
    %61 = arith.select %58, %60, %56 : vector<16x1xi1>, vector<16x1xi32>
    %c12_i32 = arith.constant 12 : i32
    %62 = vector.broadcast %c12_i32 : i32 to vector<16x1xi32>
    %63 = arith.cmpi eq, %0, %62 : vector<16x1xi32>
    %c12 = arith.constant 12 : index
    %64 = memref.load %arg1[%c12] : memref<16xi32, #tpu.memory_space<smem>>
    %65 = vector.broadcast %64 : i32 to vector<16x1xi32>
    %66 = arith.select %63, %65, %61 : vector<16x1xi1>, vector<16x1xi32>
    %c13_i32 = arith.constant 13 : i32
    %67 = vector.broadcast %c13_i32 : i32 to vector<16x1xi32>
    %68 = arith.cmpi eq, %0, %67 : vector<16x1xi32>
    %c13 = arith.constant 13 : index
    %69 = memref.load %arg1[%c13] : memref<16xi32, #tpu.memory_space<smem>>
    %70 = vector.broadcast %69 : i32 to vector<16x1xi32>
    %71 = arith.select %68, %70, %66 : vector<16x1xi1>, vector<16x1xi32>
    %c14_i32 = arith.constant 14 : i32
    %72 = vector.broadcast %c14_i32 : i32 to vector<16x1xi32>
    %73 = arith.cmpi eq, %0, %72 : vector<16x1xi32>
    %c14 = arith.constant 14 : index
    %74 = memref.load %arg1[%c14] : memref<16xi32, #tpu.memory_space<smem>>
    %75 = vector.broadcast %74 : i32 to vector<16x1xi32>
    %76 = arith.select %73, %75, %71 : vector<16x1xi1>, vector<16x1xi32>
    %c15_i32 = arith.constant 15 : i32
    %77 = vector.broadcast %c15_i32 : i32 to vector<16x1xi32>
    %78 = arith.cmpi eq, %0, %77 : vector<16x1xi32>
    %c15 = arith.constant 15 : index
    %79 = memref.load %arg1[%c15] : memref<16xi32, #tpu.memory_space<smem>>
    %80 = vector.broadcast %79 : i32 to vector<16x1xi32>
    %81 = arith.select %78, %80, %76 : vector<16x1xi1>, vector<16x1xi32>
    %c8_i32_1 = arith.constant 8 : i32
    %c0_i32_2 = arith.constant 0 : i32
    %82 = arith.cmpi eq, %c8_i32_1, %c0_i32_2 : i32
    %c1_i32_3 = arith.constant 1 : i32
    %83 = arith.select %82, %c1_i32_3, %c8_i32_1 : i32
    %84 = vector.broadcast %83 : i32 to vector<16x1xi32>
    %85 = arith.remsi %0, %84 : vector<16x1xi32>
    %c0_i32_4 = arith.constant 0 : i32
    %86 = vector.broadcast %c0_i32_4 : i32 to vector<16x1xi32>
    %87 = arith.cmpi ne, %85, %86 : vector<16x1xi32>
    %c0_i32_5 = arith.constant 0 : i32
    %88 = vector.broadcast %c0_i32_5 : i32 to vector<16x1xi32>
    %89 = arith.cmpi slt, %85, %88 : vector<16x1xi32>
    %c0_i32_6 = arith.constant 0 : i32
    %90 = arith.cmpi slt, %83, %c0_i32_6 : i32
    %91 = vector.broadcast %90 : i1 to vector<16x1xi1>
    %92 = vector.broadcast %91 : vector<16x1xi1> to vector<16x1xi1>
    %93 = arith.xori %89, %92 : vector<16x1xi1>
    %94 = arith.andi %93, %87 : vector<16x1xi1>
    %95 = vector.broadcast %83 : i32 to vector<16x1xi32>
    %96 = arith.addi %85, %95 : vector<16x1xi32>
    %97 = arith.select %94, %96, %85 : vector<16x1xi1>, vector<16x1xi32>
    %c64_i32 = arith.constant 64 : i32
    %98 = vector.broadcast %c64_i32 : i32 to vector<16x1xi32>
    %99 = arith.addi %97, %98 : vector<16x1xi32>
    %100 = tpu.iota {dimensions = array<i32: 1>} : vector<16x80xi32>
    %101 = vector.broadcast %81 : vector<16x1xi32> to vector<16x80xi32>
    %102 = arith.cmpi eq, %100, %101 : vector<16x80xi32>
    %103 = vector.broadcast %99 : vector<16x1xi32> to vector<16x80xi32>
    %104 = arith.cmpi eq, %100, %103 : vector<16x80xi32>
    %105 = arith.ori %102, %104 : vector<16x80xi1>
    %106 = arith.extui %105 : vector<16x80xi1> to vector<16x80xi32>
    %107 = arith.sitofp %106 : vector<16x80xi32> to vector<16x80xf32>
    %c0_7 = arith.constant 0 : index
    %c0_8 = arith.constant 0 : index
    %108 = vector.load %arg3[%c0_7, %c0_8] : memref<536x128xf32, #tpu.memory_space<vmem>>, vector<80x32xf32>
    %cst = arith.constant dense<0.000000e+00> : vector<16x32xf32>
    %109 = tpu.matmul %107, %108, %cst {dimension_numbers = #tpu.dot_dimension_numbers<[1], [0], [0], [1], [0, 0, 1, 1], [], []>} : vector<16x80xf32>, vector<80x32xf32>, vector<16x32xf32> -> vector<16x32xf32>
    %c88 = arith.constant 88 : index
    %c0_9 = arith.constant 0 : index
    %110 = vector.load %arg3[%c88, %c0_9] : memref<536x128xf32, #tpu.memory_space<vmem>>, vector<1x32xf32>
    %c152 = arith.constant 152 : index
    %c0_10 = arith.constant 0 : index
    %111 = vector.load %arg3[%c152, %c0_10] : memref<536x128xf32, #tpu.memory_space<vmem>>, vector<32x32xf32>
    %c96 = arith.constant 96 : index
    %c0_11 = arith.constant 0 : index
    %112 = vector.load %arg3[%c96, %c0_11] : memref<536x128xf32, #tpu.memory_space<vmem>>, vector<1x32xf32>
    %113 = vector.broadcast %110 : vector<1x32xf32> to vector<16x32xf32>
    %114 = arith.mulf %109, %113 : vector<16x32xf32>
    %cst_12 = arith.constant dense<0.000000e+00> : vector<16xf32>
    %115 = vector.multi_reduction <add>, %114, %cst_12 [1] : vector<16x32xf32> to vector<16xf32>
    %116 = vector.shape_cast %115 : vector<16xf32> to vector<16x1xf32>
    %c0_13 = arith.constant 0 : index
    %117 = memref.load %arg2[%c0_13] : memref<2xf32, #tpu.memory_space<smem>>
    %118 = vector.broadcast %117 : f32 to vector<16x1xf32>
    %119 = arith.addf %116, %118 : vector<16x1xf32>
    %120 = math.cos %119 : vector<16x1xf32>
    %121 = math.exp %120 : vector<16x1xf32>
    %cst_14 = arith.constant dense<0.000000e+00> : vector<16x32xf32>
    %122 = tpu.matmul %109, %111, %cst_14 {dimension_numbers = #tpu.dot_dimension_numbers<[1], [0], [0], [1], [0, 0, 1, 1], [], []>} : vector<16x32xf32>, vector<32x32xf32>, vector<16x32xf32> -> vector<16x32xf32>
    %123 = vector.broadcast %112 : vector<1x32xf32> to vector<16x32xf32>
    %124 = arith.addf %122, %123 : vector<16x32xf32>
    %125 = vector.broadcast %121 : vector<16x1xf32> to vector<16x32xf32>
    %126 = arith.mulf %125, %124 : vector<16x32xf32>
    %127 = vector.shape_cast %126 : vector<16x32xf32> to vector<2x8x32xf32>
    %cst_15 = arith.constant dense<0.000000e+00> : vector<2x32xf32>
    %128 = vector.multi_reduction <add>, %127, %cst_15 [1] : vector<2x8x32xf32> to vector<2x32xf32>
    %129 = vector.shape_cast %121 : vector<16x1xf32> to vector<2x8x1xf32>
    %cst_16 = arith.constant dense<0.000000e+00> : vector<2x1xf32>
    %130 = vector.multi_reduction <add>, %129, %cst_16 [1] : vector<2x8x1xf32> to vector<2x1xf32>
    %131 = vector.broadcast %130 : vector<2x1xf32> to vector<2x32xf32>
    %132 = arith.divf %128, %131 : vector<2x32xf32>
    %c184 = arith.constant 184 : index
    %c0_17 = arith.constant 0 : index
    %133 = vector.load %arg3[%c184, %c0_17] : memref<536x128xf32, #tpu.memory_space<vmem>>, vector<32x128xf32>
    %c216 = arith.constant 216 : index
    %c0_18 = arith.constant 0 : index
    %134 = vector.load %arg3[%c216, %c0_18] : memref<536x128xf32, #tpu.memory_space<vmem>>, vector<128x32xf32>
    %cst_19 = arith.constant dense<0.000000e+00> : vector<2x128xf32>
    %135 = tpu.matmul %132, %133, %cst_19 {dimension_numbers = #tpu.dot_dimension_numbers<[1], [0], [0], [1], [0, 0, 1, 1], [], []>} : vector<2x32xf32>, vector<32x128xf32>, vector<2x128xf32> -> vector<2x128xf32>
    %cst_20 = arith.constant 5.000000e-01 : f32
    %136 = vector.broadcast %cst_20 : f32 to vector<2x128xf32>
    %137 = arith.mulf %136, %135 : vector<2x128xf32>
    %cst_21 = arith.constant 0.707106769 : f32
    %138 = vector.broadcast %cst_21 : f32 to vector<2x128xf32>
    %139 = arith.mulf %135, %138 : vector<2x128xf32>
    %140 = math.erf %139 : vector<2x128xf32>
    %cst_22 = arith.constant 1.000000e+00 : f32
    %141 = vector.broadcast %cst_22 : f32 to vector<2x128xf32>
    %142 = arith.addf %141, %140 : vector<2x128xf32>
    %143 = arith.mulf %137, %142 : vector<2x128xf32>
    %cst_23 = arith.constant dense<0.000000e+00> : vector<2x32xf32>
    %144 = tpu.matmul %143, %134, %cst_23 {dimension_numbers = #tpu.dot_dimension_numbers<[1], [0], [0], [1], [0, 0, 1, 1], [], []>} : vector<2x128xf32>, vector<128x32xf32>, vector<2x32xf32> -> vector<2x32xf32>
    %c344 = arith.constant 344 : index
    %c0_24 = arith.constant 0 : index
    %145 = vector.load %arg3[%c344, %c0_24] : memref<536x128xf32, #tpu.memory_space<vmem>>, vector<32x32xf32>
    %c112 = arith.constant 112 : index
    %c0_25 = arith.constant 0 : index
    %146 = vector.load %arg3[%c112, %c0_25] : memref<536x128xf32, #tpu.memory_space<vmem>>, vector<1x32xf32>
    %c376 = arith.constant 376 : index
    %c0_26 = arith.constant 0 : index
    %147 = vector.load %arg3[%c376, %c0_26] : memref<536x128xf32, #tpu.memory_space<vmem>>, vector<32x128xf32>
    %c408 = arith.constant 408 : index
    %c0_27 = arith.constant 0 : index
    %148 = vector.load %arg3[%c408, %c0_27] : memref<536x128xf32, #tpu.memory_space<vmem>>, vector<128x32xf32>
    %cst_28 = arith.constant dense<0.000000e+00> : vector<2x32xf32>
    %149 = tpu.matmul %144, %145, %cst_28 {dimension_numbers = #tpu.dot_dimension_numbers<[1], [0], [0], [1], [0, 0, 1, 1], [], []>} : vector<2x32xf32>, vector<32x32xf32>, vector<2x32xf32> -> vector<2x32xf32>
    %150 = vector.broadcast %146 : vector<1x32xf32> to vector<2x32xf32>
    %151 = arith.addf %149, %150 : vector<2x32xf32>
    %cst_29 = arith.constant dense<0.000000e+00> : vector<2x128xf32>
    %152 = tpu.matmul %151, %147, %cst_29 {dimension_numbers = #tpu.dot_dimension_numbers<[1], [0], [0], [1], [0, 0, 1, 1], [], []>} : vector<2x32xf32>, vector<32x128xf32>, vector<2x128xf32> -> vector<2x128xf32>
    %cst_30 = arith.constant 5.000000e-01 : f32
    %153 = vector.broadcast %cst_30 : f32 to vector<2x128xf32>
    %154 = arith.mulf %153, %152 : vector<2x128xf32>
    %cst_31 = arith.constant 0.707106769 : f32
    %155 = vector.broadcast %cst_31 : f32 to vector<2x128xf32>
    %156 = arith.mulf %152, %155 : vector<2x128xf32>
    %157 = math.erf %156 : vector<2x128xf32>
    %cst_32 = arith.constant 1.000000e+00 : f32
    %158 = vector.broadcast %cst_32 : f32 to vector<2x128xf32>
    %159 = arith.addf %158, %157 : vector<2x128xf32>
    %160 = arith.mulf %154, %159 : vector<2x128xf32>
    %cst_33 = arith.constant dense<0.000000e+00> : vector<2x32xf32>
    %161 = tpu.matmul %160, %148, %cst_33 {dimension_numbers = #tpu.dot_dimension_numbers<[1], [0], [0], [1], [0, 0, 1, 1], [], []>} : vector<2x128xf32>, vector<128x32xf32>, vector<2x32xf32> -> vector<2x32xf32>
    %c80 = arith.constant 80 : index
    %c0_34 = arith.constant 0 : index
    %162 = vector.load %arg3[%c80, %c0_34] : memref<536x128xf32, #tpu.memory_space<vmem>>, vector<1x32xf32>
    %cst_35 = arith.constant dense<0.000000e+00> : vector<2xf32>
    %163 = vector.multi_reduction <add>, %161, %cst_35 [1] : vector<2x32xf32> to vector<2xf32>
    %164 = vector.shape_cast %163 : vector<2xf32> to vector<2x1xf32>
    %cst_36 = arith.constant 3.200000e+01 : f32
    %165 = vector.broadcast %cst_36 : f32 to vector<2x1xf32>
    %166 = arith.divf %164, %165 : vector<2x1xf32>
    %167 = vector.broadcast %166 : vector<2x1xf32> to vector<2x32xf32>
    %168 = arith.subf %161, %167 : vector<2x32xf32>
    %169 = arith.mulf %168, %168 : vector<2x32xf32>
    %cst_37 = arith.constant dense<0.000000e+00> : vector<2xf32>
    %170 = vector.multi_reduction <add>, %169, %cst_37 [1] : vector<2x32xf32> to vector<2xf32>
    %171 = vector.shape_cast %170 : vector<2xf32> to vector<2x1xf32>
    %cst_38 = arith.constant 3.200000e+01 : f32
    %172 = vector.broadcast %cst_38 : f32 to vector<2x1xf32>
    %173 = arith.divf %171, %172 : vector<2x1xf32>
    %cst_39 = arith.constant 9.99999974E-6 : f32
    %174 = vector.broadcast %cst_39 : f32 to vector<2x1xf32>
    %175 = arith.addf %173, %174 : vector<2x1xf32>
    %176 = math.rsqrt %175 : vector<2x1xf32>
    %177 = vector.broadcast %176 : vector<2x1xf32> to vector<2x32xf32>
    %178 = arith.mulf %168, %177 : vector<2x32xf32>
    %179 = vector.broadcast %162 : vector<1x32xf32> to vector<2x32xf32>
    %180 = arith.mulf %178, %179 : vector<2x32xf32>
    %c120 = arith.constant 120 : index
    %c0_40 = arith.constant 0 : index
    %181 = vector.load %arg3[%c120, %c0_40] : memref<536x128xf32, #tpu.memory_space<vmem>>, vector<32x128xf32>
    %cst_41 = arith.constant dense<0.000000e+00> : vector<2x128xf32>
    %182 = tpu.matmul %180, %181, %cst_41 {dimension_numbers = #tpu.dot_dimension_numbers<[1], [0], [0], [1], [0, 0, 1, 1], [], []>} : vector<2x32xf32>, vector<32x128xf32>, vector<2x128xf32> -> vector<2x128xf32>
    %183 = vector.extract_strided_slice %182 {offsets = [0, 0], sizes = [1, 128], strides = [1, 1]} : vector<2x128xf32> to vector<1x128xf32>
    %184 = vector.shape_cast %183 : vector<1x128xf32> to vector<1x128xf32>
    %185 = vector.broadcast %184 : vector<1x128xf32> to vector<8x128xf32>
    %c0_42 = arith.constant 0 : index
    %c0_43 = arith.constant 0 : index
    %186 = vector.load %arg4[%c0_42, %c0_43] : memref<16x128xf32, #tpu.memory_space<vmem>>, vector<8x128xf32>
    tpu.vector_store %arg4[%c0_42, %c0_43], %185 {strides = array<i32>} : memref<16x128xf32, #tpu.memory_space<vmem>>, vector<8x128xf32>,
    %187 = vector.extract_strided_slice %182 {offsets = [1, 0], sizes = [1, 128], strides = [1, 1]} : vector<2x128xf32> to vector<1x128xf32>
    %188 = vector.shape_cast %187 : vector<1x128xf32> to vector<1x128xf32>
    %189 = vector.broadcast %188 : vector<1x128xf32> to vector<8x128xf32>
    %c8_44 = arith.constant 8 : index
    %c0_45 = arith.constant 0 : index
    %190 = vector.load %arg4[%c8_44, %c0_45] : memref<16x128xf32, #tpu.memory_space<vmem>>, vector<8x128xf32>
    tpu.vector_store %arg4[%c8_44, %c0_45], %189 {strides = array<i32>} : memref<16x128xf32, #tpu.memory_space<vmem>>, vector<8x128xf32>,
    return
  }
  func.func @transform_0(%arg0: i32) -> i32 {
    %c0_i32 = arith.constant 0 : i32
    %c0_i32_0 = arith.constant 0 : i32
    return %c0_i32 : i32
  }
  func.func @transform_1(%arg0: i32) -> i32 {
    %c0_i32 = arith.constant 0 : i32
    %c0_i32_0 = arith.constant 0 : i32
    return %c0_i32 : i32
  }
  func.func @transform_2(%arg0: i32) -> (i32, i32) {
    %c0_i32 = arith.constant 0 : i32
    %c0_i32_0 = arith.constant 0 : i32
    %c0_i32_1 = arith.constant 0 : i32
    return %c0_i32, %c0_i32_0 : i32, i32
  }
  func.func @transform_3(%arg0: i32) -> (i32, i32) {
    %c0_i32 = arith.constant 0 : i32
    %c0_i32_0 = arith.constant 0 : i32
    %c0_i32_1 = arith.constant 0 : i32
    return %c0_i32, %c0_i32_0 : i32, i32
  }
}

</mosaic_0001>

<llo_original>
// kernel: forward_pallas.1
$region0: #{forward_pallas.1}
  #allocation0 [shape = 'u32[]', space=smem, size = 0x4, offset = 0x4, fixed_abs, tag = 'smem constant byte address 0x4 - core index']
  #allocation1 [shape = 'u32[144,128]{1,0:T(1,128)}', space=vmem, size = 0x12000, scoped, tag = 'internal scratch']
  %s0 = inlined_call_operand.vmem [shape: s32[16], index: 0, kind: input, shape index: {}]
  %s1 = inlined_call_operand.vmem [shape: f32[2], index: 1, kind: input, shape index: {}]
  %s2 = inlined_call_operand.hbm [shape: f32[536,128], index: 2, kind: input, shape index: {}]
  %s3 = inlined_call_operand.vmem [shape: f32[16,128], index: 3, kind: output, shape index: {}]
  %s4 = sld [smem:[#allocation0]]
  $region34: #{forward_pallas.1} parent=0
    _
  %s6 = ssub.s32 1, %s4
  %s7 = scalar_select 0, %s6, %s4
  $region1: #{forward_pallas.1} parent=0
    #allocation2 [shape = 'u8[512]{0}', space=smem, size = 0x200, scoped, tag = 'input window, operand 0, single buffered']
    #allocation3 [shape = 's32[1]{0}', space=sflag, size = 0x4, scoped, tag = 'scoped memory for forward_pallas.1']
    #allocation4 [shape = 's32[1]{0}', space=sflag, size = 0x4, scoped, tag = 'scoped memory for forward_pallas.1']
    #allocation5 [shape = 'u8[512]{0}', space=smem, size = 0x200, scoped, tag = 'input window, operand 1, single buffered']
    #allocation6 [shape = 's32[1]{0}', space=sflag, size = 0x4, scoped, tag = 'scoped memory for forward_pallas.1']
    #allocation7 [shape = 'u8[274432]{0}', space=vmem, size = 0x43000, scoped, tag = 'input window, operand 2, single buffered']
    %8 = vsyncpa [#allocation4], 0
    %9 = vsyncpa [#allocation6], 0
    %10 = vsyncpa [#allocation3], 0
    // Predicated region
    $region2: #{forward_pallas.1} parent=1 // pred_check
      _
    $region3: #{forward_pallas.1} parent=1 // pred_check_branch
      %12 = sbr.rel (0) target = $region5
    $region4: #{forward_pallas.1} parent=1 // pred_region
      %s14 = ssub.s32 16, 16
      %15 = vsyncadd [#allocation4], %s14
      %s17 = sshll.u32 %s0, 4
      %s18 = int_to_ptr.vmem [resolvable:$true] %s17
      %20 = dma.vmem_to_smem %s18, 16, [#allocation2], [#allocation4]
    $region5: #{forward_pallas.1} parent=1 // pred_fallthru
      _
    // Predicated region
    $region6: #{forward_pallas.1} parent=1 // pred_check
      _
    $region7: #{forward_pallas.1} parent=1 // pred_check_branch
      %22 = sbr.rel (0) target = $region9
    $region8: #{forward_pallas.1} parent=1 // pred_region
      %s24 = ssub.s32 16, 16
      %25 = vsyncadd [#allocation6], %s24
      %s27 = sshll.u32 %s1, 4
      %s28 = int_to_ptr.vmem [resolvable:$true] %s27
      %30 = dma.vmem_to_smem %s28, 16, [#allocation5], [#allocation6]
    $region9: #{forward_pallas.1} parent=1 // pred_fallthru
      _
    // Predicated region
    $region10: #{forward_pallas.1} parent=1 // pred_check
      _
    $region11: #{forward_pallas.1} parent=1 // pred_check_branch
      %32 = sbr.rel (0) target = $region13
    $region12: #{forward_pallas.1} parent=1 // pred_region
      %s34 = ssub.s32 8576, 8576
      %35 = vsyncadd [#allocation3], %s34
      %s36 = sshll.u32 [#allocation7], 4
      %s37 = int_to_ptr.vmem [resolvable:$true] %s36
      %42 = dma.hbm_to_vmem [thread:$0]  %s2, 8576, %s37, [#allocation3], 128, 128, 8
    $region13: #{forward_pallas.1} parent=1 // pred_fallthru
      _
    // Predicated region
    $region14: #{forward_pallas.1} parent=1 // pred_check
      _
    $region15: #{forward_pallas.1} parent=1 // pred_check_branch
      %44 = sbr.rel (0) target = $region17
    $region16: #{forward_pallas.1} parent=1 // pred_region
      %45 = dma.done [#allocation4], 16
    $region17: #{forward_pallas.1} parent=1 // pred_fallthru
      _
    // Predicated region
    $region18: #{forward_pallas.1} parent=1 // pred_check
      _
    $region19: #{forward_pallas.1} parent=1 // pred_check_branch
      %47 = sbr.rel (0) target = $region21
    $region20: #{forward_pallas.1} parent=1 // pred_region
      %48 = dma.done [#allocation6], 16
    $region21: #{forward_pallas.1} parent=1 // pred_fallthru
      _
    // Predicated region
    $region22: #{forward_pallas.1} parent=1 // pred_check
      _
    $region23: #{forward_pallas.1} parent=1 // pred_check_branch
      %50 = sbr.rel (0) target = $region25
    $region24: #{forward_pallas.1} parent=1 // pred_region
      %51 = dma.done [#allocation3], 8576
    $region25: #{forward_pallas.1} parent=1 // pred_fallthru
      _
    %52 = sfence
    %v53 = vlaneseq
    %v54 = vshrl.u32 %v53, 7
    %v55 = vadd.s32 %v54, 8
    %vm56 = vcmp.eq.s32.totalorder %v54, 0
    %vm57 = vcmp.eq.s32.totalorder %v55, 0
    %s58 = sld [smem:[#allocation2]]
    %v59 = vstv %s58
    %v60 = vsel %vm56, %v59, 0
    %v61 = vsel %vm57, %v59, 0
    %vm62 = vcmp.eq.s32.totalorder %v54, 1
    %vm63 = vcmp.eq.s32.totalorder %v55, 1
    %s64 = sld [smem:[#allocation2 + $0x1]]
    %v65 = vstv %s64
    %v66 = vsel %vm62, %v65, %v60
    %v67 = vsel %vm63, %v65, %v61
    %vm68 = vcmp.eq.s32.totalorder %v54, 2
    %vm69 = vcmp.eq.s32.totalorder %v55, 2
    %s70 = sld [smem:[#allocation2 + $0x2]]
    %v71 = vstv %s70
    %v72 = vsel %vm68, %v71, %v66
    %v73 = vsel %vm69, %v71, %v67
    %vm74 = vcmp.eq.s32.totalorder %v54, 3
    %vm75 = vcmp.eq.s32.totalorder %v55, 3
    %s76 = sld [smem:[#allocation2 + $0x3]]
    %v77 = vstv %s76
    %v78 = vsel %vm74, %v77, %v72
    %v79 = vsel %vm75, %v77, %v73
    %vm80 = vcmp.eq.s32.totalorder %v54, 4
    %vm81 = vcmp.eq.s32.totalorder %v55, 4
    %s82 = sld [smem:[#allocation2 + $0x4]]
    %v83 = vstv %s82
    %v84 = vsel %vm80, %v83, %v78
    %v85 = vsel %vm81, %v83, %v79
    %vm86 = vcmp.eq.s32.totalorder %v54, 5
    %vm87 = vcmp.eq.s32.totalorder %v55, 5
    %s88 = sld [smem:[#allocation2 + $0x5]]
    %v89 = vstv %s88
    %v90 = vsel %vm86, %v89, %v84
    %v91 = vsel %vm87, %v89, %v85
    %vm92 = vcmp.eq.s32.totalorder %v54, 6
    %vm93 = vcmp.eq.s32.totalorder %v55, 6
    %s94 = sld [smem:[#allocation2 + $0x6]]
    %v95 = vstv %s94
    %v96 = vsel %vm92, %v95, %v90
    %v97 = vsel %vm93, %v95, %v91
    %vm98 = vcmp.eq.s32.totalorder %v54, 7
    %vm99 = vcmp.eq.s32.totalorder %v55, 7
    %s100 = sld [smem:[#allocation2 + $0x7]]
    %v101 = vstv %s100
    %v102 = vsel %vm98, %v101, %v96
    %v103 = vsel %vm99, %v101, %v97
    %vm104 = vcmp.eq.s32.totalorder %v54, 8
    %vm105 = vcmp.eq.s32.totalorder %v55, 8
    %s106 = sld [smem:[#allocation2 + $0x8]]
    %v107 = vstv %s106
    %v108 = vsel %vm104, %v107, %v102
    %v109 = vsel %vm105, %v107, %v103
    %vm110 = vcmp.eq.s32.totalorder %v54, 9
    %vm111 = vcmp.eq.s32.totalorder %v55, 9
    %s112 = sld [smem:[#allocation2 + $0x9]]
    %v113 = vstv %s112
    %v114 = vsel %vm110, %v113, %v108
    %v115 = vsel %vm111, %v113, %v109
    %vm116 = vcmp.eq.s32.totalorder %v54, 10
    %vm117 = vcmp.eq.s32.totalorder %v55, 10
    %s118 = sld [smem:[#allocation2 + $0xa]]
    %v119 = vstv %s118
    %v120 = vsel %vm116, %v119, %v114
    %v121 = vsel %vm117, %v119, %v115
    %vm122 = vcmp.eq.s32.totalorder %v54, 11
    %vm123 = vcmp.eq.s32.totalorder %v55, 11
    %s124 = sld [smem:[#allocation2 + $0xb]]
    %v125 = vstv %s124
    %v126 = vsel %vm122, %v125, %v120
    %v127 = vsel %vm123, %v125, %v121
    %vm128 = vcmp.eq.s32.totalorder %v54, 12
    %vm129 = vcmp.eq.s32.totalorder %v55, 12
    %s130 = sld [smem:[#allocation2 + $0xc]]
    %v131 = vstv %s130
    %v132 = vsel %vm128, %v131, %v126
    %v133 = vsel %vm129, %v131, %v127
    %vm134 = vcmp.eq.s32.totalorder %v54, 13
    %vm135 = vcmp.eq.s32.totalorder %v55, 13
    %s136 = sld [smem:[#allocation2 + $0xd]]
    %v137 = vstv %s136
    %v138 = vsel %vm134, %v137, %v132
    %v139 = vsel %vm135, %v137, %v133
    %vm140 = vcmp.eq.s32.totalorder %v54, 14
    %vm141 = vcmp.eq.s32.totalorder %v55, 14
    %s142 = sld [smem:[#allocation2 + $0xe]]
    %v143 = vstv %s142
    %v144 = vsel %vm140, %v143, %v138
    %v145 = vsel %vm141, %v143, %v139
    %vm146 = vcmp.eq.s32.totalorder %v54, 15
    %vm147 = vcmp.eq.s32.totalorder %v55, 15
    %s148 = sld [smem:[#allocation2 + $0xf]]
    %v149 = vstv %s148
    %v150 = vsel %vm146, %v149, %v144
    %v151 = vsel %vm147, %v149, %v145
    %vm152 = vcmp.lt.s32.totalorder %v54, 0
    %v153 = vsub.s32 0, %v54
    %v154 = vsel %vm152, %v153, %v54
    %v155 = vshrl.u32 %v154, 3
    %v156 = vand.u32 %v154, 7
    %v157 = vsub.s32 0, %v156
    %v158 = vsel %vm152, %v157, %v156
    %vm159 = vcmp.lt.s32.totalorder %v55, 0
    %v160 = vsub.s32 0, %v55
    %v161 = vsel %vm159, %v160, %v55
    %v162 = vshrl.u32 %v161, 3
    %v163 = vand.u32 %v161, 7
    %v164 = vsub.s32 0, %v163
    %v165 = vsel %vm159, %v164, %v163
    %vm166 = vcmp.ne.s32.totalorder %v158, 0
    %vm167 = vcmp.ne.s32.totalorder %v165, 0
    %vm168 = vcmp.lt.s32.totalorder %v158, 0
    %vm169 = vcmp.lt.s32.totalorder %v165, 0
    %vm170 = vmand %vm168, %vm166
    %vm171 = vmand %vm169, %vm167
    %v172 = vadd.s32 %v158, 8
    %v173 = vadd.s32 %v165, 8
    %v174 = vsel %vm170, %v172, %v158
    %v175 = vsel %vm171, %v173, %v165
    %v176 = vadd.s32 %v174, 64
    %v177 = vadd.s32 %v175, 64
    %v178 = vlaneseq
    %v179 = vand.u32 %v178, 127
    %vm180 = vcmp.eq.s32.totalorder %v179, %v150
    %vm181 = vcmp.eq.s32.totalorder %v179, %v151
    %vm182 = vcmp.eq.s32.totalorder %v179, %v176
    %vm183 = vcmp.eq.s32.totalorder %v179, %v177
    %vm184 = vmor %vm180, %vm182
    %vm185 = vmor %vm181, %vm183
    %v186 = vsel %vm184, 1, 0
    %v187 = vsel %vm185, 1, 0
    %v188 = vcvt.s32.f32 %v186
    %v189 = vcvt.s32.f32 %v187
    %v190 = vld [vmem:[#allocation7] sm:$0xff]
    %v191 = vld [vmem:[#allocation7 + $0x8] sm:$0xff]
    %v192 = vld [vmem:[#allocation7 + $0x10] sm:$0xff]
    %v193 = vld [vmem:[#allocation7 + $0x18] sm:$0xff]
    %v194 = vld [vmem:[#allocation7 + $0x20] sm:$0xff]
    %v195 = vld [vmem:[#allocation7 + $0x28] sm:$0xff]
    %v196 = vld [vmem:[#allocation7 + $0x30] sm:$0xff]
    %v197 = vld [vmem:[#allocation7 + $0x38] sm:$0xff]
    %v198 = vld [vmem:[#allocation7 + $0x40] sm:$0xff]
    %v199 = vld [vmem:[#allocation7 + $0x48] sm:$0xff]
    %vm200 = vcmask 654336
    %v202 = vsel %vm200, %v188, 0
    %v205 = vsel %vm200, %v189, 0
    %207 = vmatprep.subr.mxu0 0.0
    %208 = vmatpush1.msra.mxu0 0.0
    %209 = vmatprep.subr.mxu0 0.0
    %210 = vmatpush1.msra.mxu0 0.0
    %211 = vmatprep.subr.mxu0 0.0
    %212 = vmatpush1.msra.mxu0 0.0
    %213 = vmatprep.subr.mxu0 0.0
    %214 = vmatpush1.msra.mxu0 0.0
    %215 = vmatprep.subr.mxu0 0.0
    %216 = vmatpush1.msra.mxu0 0.0
    %217 = vmatprep.subr.mxu0 0.0
    %218 = vmatpush1.msra.mxu0 0.0
    %219 = vmatprep.subr.mxu0 0.0
    %220 = vmatpush1.msra.mxu0 %v199
    %221 = vmatprep.subr.mxu0 0.0
    %222 = vmatpush1.msra.mxu0 %v198
    %223 = vmatprep.subr.mxu0 0.0
    %224 = vmatpush1.msra.mxu0 %v197
    %225 = vmatprep.subr.mxu0 0.0
    %226 = vmatpush1.msra.mxu0 %v196
    %227 = vmatprep.subr.mxu0 0.0
    %228 = vmatpush1.msra.mxu0 %v195
    %229 = vmatprep.subr.mxu0 0.0
    %230 = vmatpush1.msra.mxu0 %v194
    %231 = vmatprep.subr.mxu0 0.0
    %232 = vmatpush1.msra.mxu0 %v193
    %233 = vmatprep.subr.mxu0 0.0
    %234 = vmatpush1.msra.mxu0 %v192
    %235 = vmatprep.subr.mxu0 0.0
    %236 = vmatpush1.msra.mxu0 %v191
    %237 = vmatprep.subr.mxu0 0.0
    %238 = vmatpush1.msra.mxu0 %v190
    %239 = vmatprep.subr.mxu0 0.0
    %240 = vmatpush2.msra.mxu0 0.0
    %241 = vmatprep.subr.mxu0 0.0
    %242 = vmatpush2.msra.mxu0 0.0
    %243 = vmatprep.subr.mxu0 0.0
    %244 = vmatpush2.msra.mxu0 0.0
    %245 = vmatprep.subr.mxu0 0.0
    %246 = vmatpush2.msra.mxu0 0.0
    %247 = vmatprep.subr.mxu0 0.0
    %248 = vmatpush2.msra.mxu0 0.0
    %249 = vmatprep.subr.mxu0 0.0
    %250 = vmatpush2.msra.mxu0 0.0
    %251 = vmatprep.subr.mxu0 0.0
    %252 = vmatpush2.msra.mxu0 0.0
    %253 = vmatprep.subr.mxu0 0.0
    %254 = vmatpush2.msra.mxu0 0.0
    %255 = vmatprep.subr.mxu0 0.0
    %256 = vmatpush2.msra.mxu0 0.0
    %257 = vmatprep.subr.mxu0 0.0
    %258 = vmatpush2.msra.mxu0 0.0
    %259 = vmatprep.subr.mxu0 0.0
    %260 = vmatpush2.msra.mxu0 0.0
    %261 = vmatprep.subr.mxu0 0.0
    %262 = vmatpush2.msra.mxu0 0.0
    %263 = vmatprep.subr.mxu0 0.0
    %264 = vmatpush2.msra.mxu0 0.0
    %265 = vmatprep.subr.mxu0 0.0
    %266 = vmatpush2.msra.mxu0 0.0
    %267 = vmatprep.subr.mxu0 0.0
    %268 = vmatpush2.msra.mxu0 0.0
    %269 = vmatprep.subr.mxu0 0.0
    %270 = vmatpush2.msra.mxu0 0.0
    %271 = vmatprep.mubr.f32.mxu0 0.0
    %272 = vmatmul.mubr.f32.gmra.mxu0 %v202
    %v273 = vpop.f32.mrf.mxu0
    %v274 = vadd.f32 0.0, %v273
    %v275 = vpop.f32.mrf.mxu0
    %276 = vmatprep.mubr.f32.mxu0 0.0
    %277 = vmatmul.mubr.f32.gmra.mxu0 %v205
    %v278 = vpop.f32.mrf.mxu0
    %v279 = vadd.f32 0.0, %v278
    %v280 = vpop.f32.mrf.mxu0
    %281 = vdwg.mxu0
    %v282 = vld [vmem:[#allocation7 + $0x58] sm:$0x1]
    %v283 = vld [vmem:[#allocation7 + $0x98] sm:$0xff]
    %v284 = vld [vmem:[#allocation7 + $0xa0] sm:$0xff]
    %v285 = vld [vmem:[#allocation7 + $0xa8] sm:$0xff]
    %v286 = vld [vmem:[#allocation7 + $0xb0] sm:$0xff]
    %v287 = vld [vmem:[#allocation7 + $0x60] sm:$0x1]
    %v288 = vlaneseq
    %v289 = vshrl.u32 %v288, 7
    %v290 = vsub.s32 0, %v289
    %v291 = vrot.slane %v282, %v290
    %v292 = vmul.f32 %v274, %v291
    %v293 = vmul.f32 %v279, %v291
    %vm294 = vcmask 261120
    %v295 = vsel %vm294, %v292, 0.0
    %296 = vadd.xlane.f32.xlu0 %v295
    %v297 = vpop.xlane.xlu0 %296
    %v298 = vsel %vm294, %v293, 0.0
    %299 = vadd.xlane.f32.xlu0 %v298
    %v300 = vpop.xlane.xlu0 %299
    %s301 = sld [smem:[#allocation5]]
    %v302 = vstv %s301
    %v303 = vadd.f32 %v297, %v302
    %v304 = vadd.f32 %v300, %v302
    %v305 = vand.u32 2147483647, %v303
    %vm306 = vcmp.le.f32.partialorder %v305, 0.7853982
    %vm307 = vcmp.lt.s32.totalorder %v303, 0
    %v308 = vand.u32 %v303, 2139095040
    %v309 = vshrl.u32 %v308, 23
    %v310 = vsub.s32 %v309, 127
    %v311 = vand.u32 2147483647, %v303
    %v312 = vand.u32 %v311, 8388607
    %v313 = vor.u32 %v312, 8388608
    %v314 = vsub.s32 0, %v313
    %v315 = vadd.s32 %v310, 1
    %vm316 = vcmp.gt.s32.totalorder %v315, 0
    %v317 = vsel %vm316, %v315, 0
    %v318 = vshrl.u32 %v317, 5
    %v319 = vand.u32 %v317, 31
    %v320 = vsub.s32 32, %v319
    %v321 = vshrl.u32 683565275, %v320
    %v322 = vshll.u32 683565275, %v319
    %v323 = vshrl.u32 2475754826, %v320
    %v324 = vor.u32 %v322, %v323
    %v325 = vshll.u32 2475754826, %v319
    %v326 = vshrl.u32 2131351028, %v320
    %v327 = vor.u32 %v325, %v326
    %v328 = vshll.u32 2131351028, %v319
    %v329 = vshrl.u32 2102212464, %v320
    %v330 = vor.u32 %v328, %v329
    %v331 = vshll.u32 2102212464, %v319
    %v332 = vshrl.u32 920167782, %v320
    %v333 = vor.u32 %v331, %v332
    %v334 = vshll.u32 920167782, %v319
    %v335 = vshrl.u32 1326507024, %v320
    %v336 = vor.u32 %v334, %v335
    %vm337 = vcmp.lt.s32.totalorder %v318, 1
    %vm338 = vcmp.lt.s32.totalorder %v318, 2
    %vm339 = vcmp.lt.s32.totalorder %v318, 3
    %vm340 = vcmp.lt.s32.totalorder %v318, 4
    %v341 = vsel %vm337, %v321, %v324
    %v342 = vsel %vm340, %v330, 2102212464
    %v343 = vsel %vm339, %v327, %v342
    %v344 = vsel %vm338, %v341, %v343
    %v345 = vsel %vm337, %v324, %v327
    %v346 = vsel %vm340, %v333, 920167782
    %v347 = vsel %vm339, %v330, %v346
    %v348 = vsel %vm338, %v345, %v347
    %v349 = vsel %vm337, %v327, %v330
    %v350 = vsel %vm340, %v336, 1326507024
    %v351 = vsel %vm339, %v333, %v350
    %v352 = vsel %vm338, %v349, %v351
    %v353 = vshll.u32 %v313, 8
    %v354 = vmul.u32.u64.compose %v353, %v352
    %v355 = vextract.low.u32 %v354
    %v356 = vextract.high.u32 %v354
    %v357 = vmul.u32.u64.compose %v353, %v348
    %v358 = vextract.low.u32 %v357
    %v359 = vextract.high.u32 %v357
    %v360 = vmul.u32 %v353, %v344
    %v361 = vadd.s32 %v356, %v358
    %vm362 = vc.u32 %v356, %v358
    %v363 = vadd.s32 %v359, 1
    %v364 = vsel %vm362, %v363, %v359
    %v365 = vadd.s32 %v360, %v364
    %v366 = vadd.s32 %v365, 536870912
    %v367 = vshrl.u32 %v366, 30
    %v368 = vshll.u32 %v367, 30
    %v369 = vsub.s32 %v365, %v368
    %vm370 = vcmp.lt.s32.totalorder %v369, 0
    %v371 = vsub.s32 0, %v369
    %v372 = vsel %vm370, %v371, %v369
    %v373 = vclz %v372
    %v374 = vsub.s32 %v373, 2
    %vm375 = vcmp.gt.s32.totalorder 0, %v374
    %v376 = vsel %vm375, 0, %v374
    %v377 = vsub.s32 32, %v376
    %v378 = vshll.u32 %v369, %v376
    %v379 = vshrl.u32 %v361, %v377
    %v380 = vor.u32 %v378, %v379
    %v381 = vsub.s32 4294967266, %v376
    %v382 = vadd.s32 %v381, 127
    %v383 = vshll.u32 %v382, 23
    %v384 = vor.u32 4788187, %v383
    %v385 = vand.u32 2147483647, %v384
    %v387 = vcvt.s32.f32 %v380
    %v388 = vmul.f32 %v387, %v385
    %v389 = vxor.u32 %v388, 2147483648
    %v390 = vsel %vm307, %v389, %v388
    %v391 = vsub.s32 4, %v367
    %v392 = vsel %vm307, %v391, %v367
    %v393 = vsel %vm306, %v303, %v390
    %v394 = vsel %vm306, 0, %v392
    %v395 = vcosq.f32.pop %v393
    %v396 = vsinq.f32.pop %v393
    %vm397 = vweird.f32 %v303
    %v398 = vand.u32 %v394, 3
    %vm399 = vcmp.lt.s32.totalorder %v398, 2
    %vm400 = vcmp.eq.s32.totalorder %v398, 0
    %v401 = vxor.u32 %v396, 2147483648
    %v402 = vsel %vm400, %v395, %v401
    %vm403 = vcmp.eq.s32.totalorder %v398, 2
    %v404 = vxor.u32 %v395, 2147483648
    %v405 = vsel %vm403, %v404, %v396
    %v406 = vsel %vm399, %v402, %v405
    %v407 = vsel %vm397, nan, %v406
    %v408 = vand.u32 2147483647, %v304
    %vm409 = vcmp.le.f32.partialorder %v408, 0.7853982
    %vm410 = vcmp.lt.s32.totalorder %v304, 0
    %v411 = vand.u32 %v304, 2139095040
    %v412 = vshrl.u32 %v411, 23
    %v413 = vsub.s32 %v412, 127
    %v414 = vand.u32 2147483647, %v304
    %v415 = vand.u32 %v414, 8388607
    %v416 = vor.u32 %v415, 8388608
    %v417 = vsub.s32 0, %v416
    %v418 = vadd.s32 %v413, 1
    %vm419 = vcmp.gt.s32.totalorder %v418, 0
    %v420 = vsel %vm419, %v418, 0
    %v421 = vshrl.u32 %v420, 5
    %v422 = vand.u32 %v420, 31
    %v423 = vsub.s32 32, %v422
    %v424 = vshrl.u32 683565275, %v423
    %v425 = vshll.u32 683565275, %v422
    %v426 = vshrl.u32 2475754826, %v423
    %v427 = vor.u32 %v425, %v426
    %v428 = vshll.u32 2475754826, %v422
    %v429 = vshrl.u32 2131351028, %v423
    %v430 = vor.u32 %v428, %v429
    %v431 = vshll.u32 2131351028, %v422
    %v432 = vshrl.u32 2102212464, %v423
    %v433 = vor.u32 %v431, %v432
    %v434 = vshll.u32 2102212464, %v422
    %v435 = vshrl.u32 920167782, %v423
    %v436 = vor.u32 %v434, %v435
    %v437 = vshll.u32 920167782, %v422
    %v438 = vshrl.u32 1326507024, %v423
    %v439 = vor.u32 %v437, %v438
    %vm440 = vcmp.lt.s32.totalorder %v421, 1
    %vm441 = vcmp.lt.s32.totalorder %v421, 2
    %vm442 = vcmp.lt.s32.totalorder %v421, 3
    %vm443 = vcmp.lt.s32.totalorder %v421, 4
    %v444 = vsel %vm440, %v424, %v427
    %v445 = vsel %vm443, %v433, 2102212464
    %v446 = vsel %vm442, %v430, %v445
    %v447 = vsel %vm441, %v444, %v446
    %v448 = vsel %vm440, %v427, %v430
    %v449 = vsel %vm443, %v436, 920167782
    %v450 = vsel %vm442, %v433, %v449
    %v451 = vsel %vm441, %v448, %v450
    %v452 = vsel %vm440, %v430, %v433
    %v453 = vsel %vm443, %v439, 1326507024
    %v454 = vsel %vm442, %v436, %v453
    %v455 = vsel %vm441, %v452, %v454
    %v456 = vshll.u32 %v416, 8
    %v457 = vmul.u32.u64.compose %v456, %v455
    %v458 = vextract.low.u32 %v457
    %v459 = vextract.high.u32 %v457
    %v460 = vmul.u32.u64.compose %v456, %v451
    %v461 = vextract.low.u32 %v460
    %v462 = vextract.high.u32 %v460
    %v463 = vmul.u32 %v456, %v447
    %v464 = vadd.s32 %v459, %v461
    %vm465 = vc.u32 %v459, %v461
    %v466 = vadd.s32 %v462, 1
    %v467 = vsel %vm465, %v466, %v462
    %v468 = vadd.s32 %v463, %v467
    %v469 = vadd.s32 %v468, 536870912
    %v470 = vshrl.u32 %v469, 30
    %v471 = vshll.u32 %v470, 30
    %v472 = vsub.s32 %v468, %v471
    %vm473 = vcmp.lt.s32.totalorder %v472, 0
    %v474 = vsub.s32 0, %v472
    %v475 = vsel %vm473, %v474, %v472
    %v476 = vclz %v475
    %v477 = vsub.s32 %v476, 2
    %vm478 = vcmp.gt.s32.totalorder 0, %v477
    %v479 = vsel %vm478, 0, %v477
    %v480 = vsub.s32 32, %v479
    %v481 = vshll.u32 %v472, %v479
    %v482 = vshrl.u32 %v464, %v480
    %v483 = vor.u32 %v481, %v482
    %v484 = vsub.s32 4294967266, %v479
    %v485 = vadd.s32 %v484, 127
    %v486 = vshll.u32 %v485, 23
    %v487 = vor.u32 4788187, %v486
    %v488 = vand.u32 2147483647, %v487
    %v490 = vcvt.s32.f32 %v483
    %v491 = vmul.f32 %v490, %v488
    %v492 = vxor.u32 %v491, 2147483648
    %v493 = vsel %vm410, %v492, %v491
    %v494 = vsub.s32 4, %v470
    %v495 = vsel %vm410, %v494, %v470
    %v496 = vsel %vm409, %v304, %v493
    %v497 = vsel %vm409, 0, %v495
    %v498 = vcosq.f32.pop %v496
    %v499 = vsinq.f32.pop %v496
    %vm500 = vweird.f32 %v304
    %v501 = vand.u32 %v497, 3
    %vm502 = vcmp.lt.s32.totalorder %v501, 2
    %vm503 = vcmp.eq.s32.totalorder %v501, 0
    %v504 = vxor.u32 %v499, 2147483648
    %v505 = vsel %vm503, %v498, %v504
    %vm506 = vcmp.eq.s32.totalorder %v501, 2
    %v507 = vxor.u32 %v498, 2147483648
    %v508 = vsel %vm506, %v507, %v499
    %v509 = vsel %vm502, %v505, %v508
    %v510 = vsel %vm500, nan, %v509
    %v511 = vmul.f32 %v407, 1.442695
    %v512 = vpow.pop %v511
    %v513 = vmul.f32 %v510, 1.442695
    %v514 = vpow.pop %v513
    %v515 = vlaneseq
    %v516 = vshrl.u32 %v515, 7
    %v517 = vsub.s32 0, %v516
    %v518 = vrot.slane %v287, %v517
    %v520 = vsel %vm294, %v274, 0
    %v523 = vsel %vm294, %v279, 0
    %525 = vmatprep.subr.mxu0 0.0
    %526 = vmatpush1.msra.mxu0 0.0
    %527 = vmatprep.subr.mxu0 0.0
    %528 = vmatpush1.msra.mxu0 0.0
    %529 = vmatprep.subr.mxu0 0.0
    %530 = vmatpush1.msra.mxu0 0.0
    %531 = vmatprep.subr.mxu0 0.0
    %532 = vmatpush1.msra.mxu0 0.0
    %533 = vmatprep.subr.mxu0 0.0
    %534 = vmatpush1.msra.mxu0 0.0
    %535 = vmatprep.subr.mxu0 0.0
    %536 = vmatpush1.msra.mxu0 0.0
    %537 = vmatprep.subr.mxu0 0.0
    %538 = vmatpush1.msra.mxu0 0.0
    %539 = vmatprep.subr.mxu0 0.0
    %540 = vmatpush1.msra.mxu0 0.0
    %541 = vmatprep.subr.mxu0 0.0
    %542 = vmatpush1.msra.mxu0 0.0
    %543 = vmatprep.subr.mxu0 0.0
    %544 = vmatpush1.msra.mxu0 0.0
    %545 = vmatprep.subr.mxu0 0.0
    %546 = vmatpush1.msra.mxu0 0.0
    %547 = vmatprep.subr.mxu0 0.0
    %548 = vmatpush1.msra.mxu0 0.0
    %549 = vmatprep.subr.mxu0 0.0
    %550 = vmatpush1.msra.mxu0 %v286
    %551 = vmatprep.subr.mxu0 0.0
    %552 = vmatpush1.msra.mxu0 %v285
    %553 = vmatprep.subr.mxu0 0.0
    %554 = vmatpush1.msra.mxu0 %v284
    %555 = vmatprep.subr.mxu0 0.0
    %556 = vmatpush1.msra.mxu0 %v283
    %557 = vmatprep.subr.mxu0 0.0
    %558 = vmatpush2.msra.mxu0 0.0
    %559 = vmatprep.subr.mxu0 0.0
    %560 = vmatpush2.msra.mxu0 0.0
    %561 = vmatprep.subr.mxu0 0.0
    %562 = vmatpush2.msra.mxu0 0.0
    %563 = vmatprep.subr.mxu0 0.0
    %564 = vmatpush2.msra.mxu0 0.0
    %565 = vmatprep.subr.mxu0 0.0
    %566 = vmatpush2.msra.mxu0 0.0
    %567 = vmatprep.subr.mxu0 0.0
    %568 = vmatpush2.msra.mxu0 0.0
    %569 = vmatprep.subr.mxu0 0.0
    %570 = vmatpush2.msra.mxu0 0.0
    %571 = vmatprep.subr.mxu0 0.0
    %572 = vmatpush2.msra.mxu0 0.0
    %573 = vmatprep.subr.mxu0 0.0
    %574 = vmatpush2.msra.mxu0 0.0
    %575 = vmatprep.subr.mxu0 0.0
    %576 = vmatpush2.msra.mxu0 0.0
    %577 = vmatprep.subr.mxu0 0.0
    %578 = vmatpush2.msra.mxu0 0.0
    %579 = vmatprep.subr.mxu0 0.0
    %580 = vmatpush2.msra.mxu0 0.0
    %581 = vmatprep.subr.mxu0 0.0
    %582 = vmatpush2.msra.mxu0 0.0
    %583 = vmatprep.subr.mxu0 0.0
    %584 = vmatpush2.msra.mxu0 0.0
    %585 = vmatprep.subr.mxu0 0.0
    %586 = vmatpush2.msra.mxu0 0.0
    %587 = vmatprep.subr.mxu0 0.0
    %588 = vmatpush2.msra.mxu0 0.0
    %589 = vmatprep.mubr.f32.mxu0 0.0
    %590 = vmatmul.mubr.f32.gmra.mxu0 %v520
    %v591 = vpop.f32.mrf.mxu0
    %v592 = vadd.f32 %v518, %v591
    %v593 = vpop.f32.mrf.mxu0
    %594 = vmatprep.mubr.f32.mxu0 0.0
    %595 = vmatmul.mubr.f32.gmra.mxu0 %v523
    %v596 = vpop.f32.mrf.mxu0
    %v597 = vadd.f32 %v518, %v596
    %v598 = vpop.f32.mrf.mxu0
    %599 = vdwg.mxu0
    %v600 = vmul.f32 %v512, %v592
    %v601 = vmul.f32 %v514, %v597
    %v602 = vsel %vm294, %v600, 0.0
    %v603 = vrot.slane %v602, 4
    %v604 = vadd.f32 %v602, %v603
    %v605 = vrot.slane %v604, 2
    %v606 = vadd.f32 %v604, %v605
    %v607 = vrot.slane %v606, 1
    %v608 = vadd.f32 %v606, %v607
    %v609 = vsel %vm294, %v601, 0.0
    %v610 = vrot.slane %v609, 4
    %v611 = vadd.f32 %v609, %v610
    %v612 = vrot.slane %v611, 2
    %v613 = vadd.f32 %v611, %v612
    %v614 = vrot.slane %v613, 1
    %v615 = vadd.f32 %v613, %v614
    %v616 = vrot.slane %v512, 4
    %v617 = vadd.f32 %v512, %v616
    %v618 = vrot.slane %v617, 2
    %v619 = vadd.f32 %v617, %v618
    %v620 = vrot.slane %v619, 1
    %v621 = vadd.f32 %v619, %v620
    %v622 = vrot.slane %v514, 4
    %v623 = vadd.f32 %v514, %v622
    %v624 = vrot.slane %v623, 2
    %v625 = vadd.f32 %v623, %v624
    %v626 = vrot.slane %v625, 1
    %v627 = vadd.f32 %v625, %v626
    %v628 = vrcp.pop %v621
    %v629 = vmul.f32 %v608, %v628
    %v630 = vrcp.pop %v627
    %v631 = vmul.f32 %v615, %v630
    %v632 = vld [vmem:[#allocation7 + $0xb8] sm:$0xff]
    %v633 = vld [vmem:[#allocation7 + $0xc0] sm:$0xff]
    %v634 = vld [vmem:[#allocation7 + $0xc8] sm:$0xff]
    %v635 = vld [vmem:[#allocation7 + $0xd0] sm:$0xff]
    %v636 = vld [vmem:[#allocation7 + $0xd8] sm:$0xff]
    %v637 = vld [vmem:[#allocation7 + $0xe0] sm:$0xff]
    %v638 = vld [vmem:[#allocation7 + $0xe8] sm:$0xff]
    %v639 = vld [vmem:[#allocation7 + $0xf0] sm:$0xff]
    %v640 = vld [vmem:[#allocation7 + $0xf8] sm:$0xff]
    %v641 = vld [vmem:[#allocation7 + $0x100] sm:$0xff]
    %v642 = vld [vmem:[#allocation7 + $0x108] sm:$0xff]
    %v643 = vld [vmem:[#allocation7 + $0x110] sm:$0xff]
    %v644 = vld [vmem:[#allocation7 + $0x118] sm:$0xff]
    %v645 = vld [vmem:[#allocation7 + $0x120] sm:$0xff]
    %v646 = vld [vmem:[#allocation7 + $0x128] sm:$0xff]
    %v647 = vld [vmem:[#allocation7 + $0x130] sm:$0xff]
    %v648 = vld [vmem:[#allocation7 + $0x138] sm:$0xff]
    %v649 = vld [vmem:[#allocation7 + $0x140] sm:$0xff]
    %v650 = vld [vmem:[#allocation7 + $0x148] sm:$0xff]
    %v651 = vld [vmem:[#allocation7 + $0x150] sm:$0xff]
    %vm654 = vcmask 1041409
    %v655 = vsel %vm654, %v631, %v629
    %v656 = vsel %vm294, %v655, 0
    %658 = vmatprep.subr.mxu0 0.0
    %659 = vmatpush1.msra.mxu0 0.0
    %660 = vmatprep.subr.mxu0 0.0
    %661 = vmatpush1.msra.mxu0 0.0
    %662 = vmatprep.subr.mxu0 0.0
    %663 = vmatpush1.msra.mxu0 0.0
    %664 = vmatprep.subr.mxu0 0.0
    %665 = vmatpush1.msra.mxu0 0.0
    %666 = vmatprep.subr.mxu0 0.0
    %667 = vmatpush1.msra.mxu0 0.0
    %668 = vmatprep.subr.mxu0 0.0
    %669 = vmatpush1.msra.mxu0 0.0
    %670 = vmatprep.subr.mxu0 0.0
    %671 = vmatpush1.msra.mxu0 0.0
    %672 = vmatprep.subr.mxu0 0.0
    %673 = vmatpush1.msra.mxu0 0.0
    %674 = vmatprep.subr.mxu0 0.0
    %675 = vmatpush1.msra.mxu0 0.0
    %676 = vmatprep.subr.mxu0 0.0
    %677 = vmatpush1.msra.mxu0 0.0
    %678 = vmatprep.subr.mxu0 0.0
    %679 = vmatpush1.msra.mxu0 0.0
    %680 = vmatprep.subr.mxu0 0.0
    %681 = vmatpush1.msra.mxu0 0.0
    %682 = vmatprep.subr.mxu0 0.0
    %683 = vmatpush1.msra.mxu0 %v635
    %684 = vmatprep.subr.mxu0 0.0
    %685 = vmatpush1.msra.mxu0 %v634
    %686 = vmatprep.subr.mxu0 0.0
    %687 = vmatpush1.msra.mxu0 %v633
    %688 = vmatprep.subr.mxu0 0.0
    %689 = vmatpush1.msra.mxu0 %v632
    %690 = vmatprep.subr.mxu0 0.0
    %691 = vmatpush2.msra.mxu0 0.0
    %692 = vmatprep.subr.mxu0 0.0
    %693 = vmatpush2.msra.mxu0 0.0
    %694 = vmatprep.subr.mxu0 0.0
    %695 = vmatpush2.msra.mxu0 0.0
    %696 = vmatprep.subr.mxu0 0.0
    %697 = vmatpush2.msra.mxu0 0.0
    %698 = vmatprep.subr.mxu0 0.0
    %699 = vmatpush2.msra.mxu0 0.0
    %700 = vmatprep.subr.mxu0 0.0
    %701 = vmatpush2.msra.mxu0 0.0
    %702 = vmatprep.subr.mxu0 0.0
    %703 = vmatpush2.msra.mxu0 0.0
    %704 = vmatprep.subr.mxu0 0.0
    %705 = vmatpush2.msra.mxu0 0.0
    %706 = vmatprep.subr.mxu0 0.0
    %707 = vmatpush2.msra.mxu0 0.0
    %708 = vmatprep.subr.mxu0 0.0
    %709 = vmatpush2.msra.mxu0 0.0
    %710 = vmatprep.subr.mxu0 0.0
    %711 = vmatpush2.msra.mxu0 0.0
    %712 = vmatprep.subr.mxu0 0.0
    %713 = vmatpush2.msra.mxu0 0.0
    %714 = vmatprep.subr.mxu0 0.0
    %715 = vmatpush2.msra.mxu0 0.0
    %716 = vmatprep.subr.mxu0 0.0
    %717 = vmatpush2.msra.mxu0 0.0
    %718 = vmatprep.subr.mxu0 0.0
    %719 = vmatpush2.msra.mxu0 0.0
    %720 = vmatprep.subr.mxu0 0.0
    %721 = vmatpush2.msra.mxu0 0.0
    %722 = vmatprep.mubr.f32.mxu0 0.0
    %723 = vmatmul.mubr.f32.gmra.mxu0 %v656
    %v724 = vpop.f32.mrf.mxu0
    %v725 = vadd.f32 0.0, %v724
    %v726 = vpop.f32.mrf.mxu0
    %727 = vdwg.mxu0
    %v728 = vmul.f32 %v725, 0.5
    %v729 = vmul.f32 %v725, 0.70710677
    %v730 = verf.f32.pop %v729
    %v731 = vadd.f32 %v730, 1.0
    %v732 = vmul.f32 %v728, %v731
    %733 = vmatprep.subr.mxu0 0.0
    %734 = vmatpush1.msra.mxu0 %v651
    %735 = vmatprep.subr.mxu0 0.0
    %736 = vmatpush1.msra.mxu0 %v650
    %737 = vmatprep.subr.mxu0 0.0
    %738 = vmatpush1.msra.mxu0 %v649
    %739 = vmatprep.subr.mxu0 0.0
    %740 = vmatpush1.msra.mxu0 %v648
    %741 = vmatprep.subr.mxu0 0.0
    %742 = vmatpush1.msra.mxu0 %v647
    %743 = vmatprep.subr.mxu0 0.0
    %744 = vmatpush1.msra.mxu0 %v646
    %745 = vmatprep.subr.mxu0 0.0
    %746 = vmatpush1.msra.mxu0 %v645
    %747 = vmatprep.subr.mxu0 0.0
    %748 = vmatpush1.msra.mxu0 %v644
    %749 = vmatprep.subr.mxu0 0.0
    %750 = vmatpush1.msra.mxu0 %v643
    %751 = vmatprep.subr.mxu0 0.0
    %752 = vmatpush1.msra.mxu0 %v642
    %753 = vmatprep.subr.mxu0 0.0
    %754 = vmatpush1.msra.mxu0 %v641
    %755 = vmatprep.subr.mxu0 0.0
    %756 = vmatpush1.msra.mxu0 %v640
    %757 = vmatprep.subr.mxu0 0.0
    %758 = vmatpush1.msra.mxu0 %v639
    %759 = vmatprep.subr.mxu0 0.0
    %760 = vmatpush1.msra.mxu0 %v638
    %761 = vmatprep.subr.mxu0 0.0
    %762 = vmatpush1.msra.mxu0 %v637
    %763 = vmatprep.subr.mxu0 0.0
    %764 = vmatpush1.msra.mxu0 %v636
    %765 = vmatprep.subr.mxu0 0.0
    %766 = vmatpush2.msra.mxu0 0.0
    %767 = vmatprep.subr.mxu0 0.0
    %768 = vmatpush2.msra.mxu0 0.0
    %769 = vmatprep.subr.mxu0 0.0
    %770 = vmatpush2.msra.mxu0 0.0
    %771 = vmatprep.subr.mxu0 0.0
    %772 = vmatpush2.msra.mxu0 0.0
    %773 = vmatprep.subr.mxu0 0.0
    %774 = vmatpush2.msra.mxu0 0.0
    %775 = vmatprep.subr.mxu0 0.0
    %776 = vmatpush2.msra.mxu0 0.0
    %777 = vmatprep.subr.mxu0 0.0
    %778 = vmatpush2.msra.mxu0 0.0
    %779 = vmatprep.subr.mxu0 0.0
    %780 = vmatpush2.msra.mxu0 0.0
    %781 = vmatprep.subr.mxu0 0.0
    %782 = vmatpush2.msra.mxu0 0.0
    %783 = vmatprep.subr.mxu0 0.0
    %784 = vmatpush2.msra.mxu0 0.0
    %785 = vmatprep.subr.mxu0 0.0
    %786 = vmatpush2.msra.mxu0 0.0
    %787 = vmatprep.subr.mxu0 0.0
    %788 = vmatpush2.msra.mxu0 0.0
    %789 = vmatprep.subr.mxu0 0.0
    %790 = vmatpush2.msra.mxu0 0.0
    %791 = vmatprep.subr.mxu0 0.0
    %792 = vmatpush2.msra.mxu0 0.0
    %793 = vmatprep.subr.mxu0 0.0
    %794 = vmatpush2.msra.mxu0 0.0
    %795 = vmatprep.subr.mxu0 0.0
    %796 = vmatpush2.msra.mxu0 0.0
    %797 = vmatprep.mubr.f32.mxu0 0.0
    %798 = vmatmul.mubr.f32.gmra.mxu0 %v732
    %v799 = vpop.f32.mrf.mxu0
    %v800 = vadd.f32 0.0, %v799
    %v801 = vpop.f32.mrf.mxu0
    %802 = vdwg.mxu0
    %v803 = vld [vmem:[#allocation7 + $0x158] sm:$0xff]
    %v804 = vld [vmem:[#allocation7 + $0x160] sm:$0xff]
    %v805 = vld [vmem:[#allocation7 + $0x168] sm:$0xff]
    %v806 = vld [vmem:[#allocation7 + $0x170] sm:$0xff]
    %v807 = vld [vmem:[#allocation7 + $0x70] sm:$0x1]
    %v808 = vld [vmem:[#allocation7 + $0x178] sm:$0xff]
    %v809 = vld [vmem:[#allocation7 + $0x180] sm:$0xff]
    %v810 = vld [vmem:[#allocation7 + $0x188] sm:$0xff]
    %v811 = vld [vmem:[#allocation7 + $0x190] sm:$0xff]
    %v812 = vld [vmem:[#allocation7 + $0x198] sm:$0xff]
    %v813 = vld [vmem:[#allocation7 + $0x1a0] sm:$0xff]
    %v814 = vld [vmem:[#allocation7 + $0x1a8] sm:$0xff]
    %v815 = vld [vmem:[#allocation7 + $0x1b0] sm:$0xff]
    %v816 = vld [vmem:[#allocation7 + $0x1b8] sm:$0xff]
    %v817 = vld [vmem:[#allocation7 + $0x1c0] sm:$0xff]
    %v818 = vld [vmem:[#allocation7 + $0x1c8] sm:$0xff]
    %v819 = vld [vmem:[#allocation7 + $0x1d0] sm:$0xff]
    %v820 = vld [vmem:[#allocation7 + $0x1d8] sm:$0xff]
    %v821 = vld [vmem:[#allocation7 + $0x1e0] sm:$0xff]
    %v822 = vld [vmem:[#allocation7 + $0x1e8] sm:$0xff]
    %v823 = vld [vmem:[#allocation7 + $0x1f0] sm:$0xff]
    %v824 = vld [vmem:[#allocation7 + $0x1f8] sm:$0xff]
    %v825 = vld [vmem:[#allocation7 + $0x200] sm:$0xff]
    %v826 = vld [vmem:[#allocation7 + $0x208] sm:$0xff]
    %v827 = vld [vmem:[#allocation7 + $0x210] sm:$0xff]
    %v828 = vlaneseq
    %v829 = vshrl.u32 %v828, 7
    %v830 = vsub.s32 0, %v829
    %v831 = vrot.slane %v807, %v830
    %v833 = vsel %vm294, %v800, 0
    %835 = vmatprep.subr.mxu0 0.0
    %836 = vmatpush1.msra.mxu0 0.0
    %837 = vmatprep.subr.mxu0 0.0
    %838 = vmatpush1.msra.mxu0 0.0
    %839 = vmatprep.subr.mxu0 0.0
    %840 = vmatpush1.msra.mxu0 0.0
    %841 = vmatprep.subr.mxu0 0.0
    %842 = vmatpush1.msra.mxu0 0.0
    %843 = vmatprep.subr.mxu0 0.0
    %844 = vmatpush1.msra.mxu0 0.0
    %845 = vmatprep.subr.mxu0 0.0
    %846 = vmatpush1.msra.mxu0 0.0
    %847 = vmatprep.subr.mxu0 0.0
    %848 = vmatpush1.msra.mxu0 0.0
    %849 = vmatprep.subr.mxu0 0.0
    %850 = vmatpush1.msra.mxu0 0.0
    %851 = vmatprep.subr.mxu0 0.0
    %852 = vmatpush1.msra.mxu0 0.0
    %853 = vmatprep.subr.mxu0 0.0
    %854 = vmatpush1.msra.mxu0 0.0
    %855 = vmatprep.subr.mxu0 0.0
    %856 = vmatpush1.msra.mxu0 0.0
    %857 = vmatprep.subr.mxu0 0.0
    %858 = vmatpush1.msra.mxu0 0.0
    %859 = vmatprep.subr.mxu0 0.0
    %860 = vmatpush1.msra.mxu0 %v806
    %861 = vmatprep.subr.mxu0 0.0
    %862 = vmatpush1.msra.mxu0 %v805
    %863 = vmatprep.subr.mxu0 0.0
    %864 = vmatpush1.msra.mxu0 %v804
    %865 = vmatprep.subr.mxu0 0.0
    %866 = vmatpush1.msra.mxu0 %v803
    %867 = vmatprep.subr.mxu0 0.0
    %868 = vmatpush2.msra.mxu0 0.0
    %869 = vmatprep.subr.mxu0 0.0
    %870 = vmatpush2.msra.mxu0 0.0
    %871 = vmatprep.subr.mxu0 0.0
    %872 = vmatpush2.msra.mxu0 0.0
    %873 = vmatprep.subr.mxu0 0.0
    %874 = vmatpush2.msra.mxu0 0.0
    %875 = vmatprep.subr.mxu0 0.0
    %876 = vmatpush2.msra.mxu0 0.0
    %877 = vmatprep.subr.mxu0 0.0
    %878 = vmatpush2.msra.mxu0 0.0
    %879 = vmatprep.subr.mxu0 0.0
    %880 = vmatpush2.msra.mxu0 0.0
    %881 = vmatprep.subr.mxu0 0.0
    %882 = vmatpush2.msra.mxu0 0.0
    %883 = vmatprep.subr.mxu0 0.0
    %884 = vmatpush2.msra.mxu0 0.0
    %885 = vmatprep.subr.mxu0 0.0
    %886 = vmatpush2.msra.mxu0 0.0
    %887 = vmatprep.subr.mxu0 0.0
    %888 = vmatpush2.msra.mxu0 0.0
    %889 = vmatprep.subr.mxu0 0.0
    %890 = vmatpush2.msra.mxu0 0.0
    %891 = vmatprep.subr.mxu0 0.0
    %892 = vmatpush2.msra.mxu0 0.0
    %893 = vmatprep.subr.mxu0 0.0
    %894 = vmatpush2.msra.mxu0 0.0
    %895 = vmatprep.subr.mxu0 0.0
    %896 = vmatpush2.msra.mxu0 0.0
    %897 = vmatprep.subr.mxu0 0.0
    %898 = vmatpush2.msra.mxu0 0.0
    %899 = vmatprep.mubr.f32.mxu0 0.0
    %900 = vmatmul.mubr.f32.gmra.mxu0 %v833
    %v901 = vpop.f32.mrf.mxu0
    %v902 = vadd.f32 %v831, %v901
    %v903 = vpop.f32.mrf.mxu0
    %904 = vdwg.mxu0
    %v906 = vsel %vm294, %v902, 0
    %908 = vmatprep.subr.mxu0 0.0
    %909 = vmatpush1.msra.mxu0 0.0
    %910 = vmatprep.subr.mxu0 0.0
    %911 = vmatpush1.msra.mxu0 0.0
    %912 = vmatprep.subr.mxu0 0.0
    %913 = vmatpush1.msra.mxu0 0.0
    %914 = vmatprep.subr.mxu0 0.0
    %915 = vmatpush1.msra.mxu0 0.0
    %916 = vmatprep.subr.mxu0 0.0
    %917 = vmatpush1.msra.mxu0 0.0
    %918 = vmatprep.subr.mxu0 0.0
    %919 = vmatpush1.msra.mxu0 0.0
    %920 = vmatprep.subr.mxu0 0.0
    %921 = vmatpush1.msra.mxu0 0.0
    %922 = vmatprep.subr.mxu0 0.0
    %923 = vmatpush1.msra.mxu0 0.0
    %924 = vmatprep.subr.mxu0 0.0
    %925 = vmatpush1.msra.mxu0 0.0
    %926 = vmatprep.subr.mxu0 0.0
    %927 = vmatpush1.msra.mxu0 0.0
    %928 = vmatprep.subr.mxu0 0.0
    %929 = vmatpush1.msra.mxu0 0.0
    %930 = vmatprep.subr.mxu0 0.0
    %931 = vmatpush1.msra.mxu0 0.0
    %932 = vmatprep.subr.mxu0 0.0
    %933 = vmatpush1.msra.mxu0 %v811
    %934 = vmatprep.subr.mxu0 0.0
    %935 = vmatpush1.msra.mxu0 %v810
    %936 = vmatprep.subr.mxu0 0.0
    %937 = vmatpush1.msra.mxu0 %v809
    %938 = vmatprep.subr.mxu0 0.0
    %939 = vmatpush1.msra.mxu0 %v808
    %940 = vmatprep.subr.mxu0 0.0
    %941 = vmatpush2.msra.mxu0 0.0
    %942 = vmatprep.subr.mxu0 0.0
    %943 = vmatpush2.msra.mxu0 0.0
    %944 = vmatprep.subr.mxu0 0.0
    %945 = vmatpush2.msra.mxu0 0.0
    %946 = vmatprep.subr.mxu0 0.0
    %947 = vmatpush2.msra.mxu0 0.0
    %948 = vmatprep.subr.mxu0 0.0
    %949 = vmatpush2.msra.mxu0 0.0
    %950 = vmatprep.subr.mxu0 0.0
    %951 = vmatpush2.msra.mxu0 0.0
    %952 = vmatprep.subr.mxu0 0.0
    %953 = vmatpush2.msra.mxu0 0.0
    %954 = vmatprep.subr.mxu0 0.0
    %955 = vmatpush2.msra.mxu0 0.0
    %956 = vmatprep.subr.mxu0 0.0
    %957 = vmatpush2.msra.mxu0 0.0
    %958 = vmatprep.subr.mxu0 0.0
    %959 = vmatpush2.msra.mxu0 0.0
    %960 = vmatprep.subr.mxu0 0.0
    %961 = vmatpush2.msra.mxu0 0.0
    %962 = vmatprep.subr.mxu0 0.0
    %963 = vmatpush2.msra.mxu0 0.0
    %964 = vmatprep.subr.mxu0 0.0
    %965 = vmatpush2.msra.mxu0 0.0
    %966 = vmatprep.subr.mxu0 0.0
    %967 = vmatpush2.msra.mxu0 0.0
    %968 = vmatprep.subr.mxu0 0.0
    %969 = vmatpush2.msra.mxu0 0.0
    %970 = vmatprep.subr.mxu0 0.0
    %971 = vmatpush2.msra.mxu0 0.0
    %972 = vmatprep.mubr.f32.mxu0 0.0
    %973 = vmatmul.mubr.f32.gmra.mxu0 %v906
    %v974 = vpop.f32.mrf.mxu0
    %v975 = vadd.f32 0.0, %v974
    %v976 = vpop.f32.mrf.mxu0
    %977 = vdwg.mxu0
    %v978 = vmul.f32 %v975, 0.5
    %v979 = vmul.f32 %v975, 0.70710677
    %v980 = verf.f32.pop %v979
    %v981 = vadd.f32 %v980, 1.0
    %v982 = vmul.f32 %v978, %v981
    %983 = vmatprep.subr.mxu0 0.0
    %984 = vmatpush1.msra.mxu0 %v827
    %985 = vmatprep.subr.mxu0 0.0
    %986 = vmatpush1.msra.mxu0 %v826
    %987 = vmatprep.subr.mxu0 0.0
    %988 = vmatpush1.msra.mxu0 %v825
    %989 = vmatprep.subr.mxu0 0.0
    %990 = vmatpush1.msra.mxu0 %v824
    %991 = vmatprep.subr.mxu0 0.0
    %992 = vmatpush1.msra.mxu0 %v823
    %993 = vmatprep.subr.mxu0 0.0
    %994 = vmatpush1.msra.mxu0 %v822
    %995 = vmatprep.subr.mxu0 0.0
    %996 = vmatpush1.msra.mxu0 %v821
    %997 = vmatprep.subr.mxu0 0.0
    %998 = vmatpush1.msra.mxu0 %v820
    %999 = vmatprep.subr.mxu0 0.0
    %1000 = vmatpush1.msra.mxu0 %v819
    %1001 = vmatprep.subr.mxu0 0.0
    %1002 = vmatpush1.msra.mxu0 %v818
    %1003 = vmatprep.subr.mxu0 0.0
    %1004 = vmatpush1.msra.mxu0 %v817
    %1005 = vmatprep.subr.mxu0 0.0
    %1006 = vmatpush1.msra.mxu0 %v816
    %1007 = vmatprep.subr.mxu0 0.0
    %1008 = vmatpush1.msra.mxu0 %v815
    %1009 = vmatprep.subr.mxu0 0.0
    %1010 = vmatpush1.msra.mxu0 %v814
    %1011 = vmatprep.subr.mxu0 0.0
    %1012 = vmatpush1.msra.mxu0 %v813
    %1013 = vmatprep.subr.mxu0 0.0
    %1014 = vmatpush1.msra.mxu0 %v812
    %1015 = vmatprep.subr.mxu0 0.0
    %1016 = vmatpush2.msra.mxu0 0.0
    %1017 = vmatprep.subr.mxu0 0.0
    %1018 = vmatpush2.msra.mxu0 0.0
    %1019 = vmatprep.subr.mxu0 0.0
    %1020 = vmatpush2.msra.mxu0 0.0
    %1021 = vmatprep.subr.mxu0 0.0
    %1022 = vmatpush2.msra.mxu0 0.0
    %1023 = vmatprep.subr.mxu0 0.0
    %1024 = vmatpush2.msra.mxu0 0.0
    %1025 = vmatprep.subr.mxu0 0.0
    %1026 = vmatpush2.msra.mxu0 0.0
    %1027 = vmatprep.subr.mxu0 0.0
    %1028 = vmatpush2.msra.mxu0 0.0
    %1029 = vmatprep.subr.mxu0 0.0
    %1030 = vmatpush2.msra.mxu0 0.0
    %1031 = vmatprep.subr.mxu0 0.0
    %1032 = vmatpush2.msra.mxu0 0.0
    %1033 = vmatprep.subr.mxu0 0.0
    %1034 = vmatpush2.msra.mxu0 0.0
    %1035 = vmatprep.subr.mxu0 0.0
    %1036 = vmatpush2.msra.mxu0 0.0
    %1037 = vmatprep.subr.mxu0 0.0
    %1038 = vmatpush2.msra.mxu0 0.0
    %1039 = vmatprep.subr.mxu0 0.0
    %1040 = vmatpush2.msra.mxu0 0.0
    %1041 = vmatprep.subr.mxu0 0.0
    %1042 = vmatpush2.msra.mxu0 0.0
    %1043 = vmatprep.subr.mxu0 0.0
    %1044 = vmatpush2.msra.mxu0 0.0
    %1045 = vmatprep.subr.mxu0 0.0
    %1046 = vmatpush2.msra.mxu0 0.0
    %1047 = vmatprep.mubr.f32.mxu0 0.0
    %1048 = vmatmul.mubr.f32.gmra.mxu0 %v982
    %v1049 = vpop.f32.mrf.mxu0
    %v1050 = vadd.f32 0.0, %v1049
    %v1051 = vpop.f32.mrf.mxu0
    %1052 = vdwg.mxu0
    %v1053 = vld [vmem:[#allocation7 + $0x50] sm:$0x1]
    %vm1054 = vcmask 254976
    %v1055 = vsel %vm1054, %v1050, 0.0
    %1056 = vadd.xlane.f32.xlu0 %v1055
    %v1057 = vpop.xlane.xlu0 %1056
    %v1058 = vrcp.pop 32.0
    %v1059 = vmul.f32 %v1057, %v1058
    %v1060 = vsub.f32 %v1050, %v1059
    %v1061 = vmul.f32 %v1060, %v1060
    %v1062 = vsel %vm1054, %v1061, 0.0
    %1063 = vadd.xlane.f32.xlu0 %v1062
    %v1064 = vpop.xlane.xlu0 %1063
    %v1065 = vmul.f32 %v1064, %v1058
    %v1066 = vadd.f32 %v1065, 1e-05
    %v1067 = vrsqrt.pop %v1066
    %v1068 = vmul.f32 %v1060, %v1067
    %v1069 = vlaneseq
    %v1070 = vshrl.u32 %v1069, 7
    %v1071 = vsub.s32 0, %v1070
    %v1072 = vrot.slane %v1053, %v1071
    %v1073 = vmul.f32 %v1068, %v1072
    %v1074 = vld [vmem:[#allocation7 + $0x78] sm:$0xff]
    %v1075 = vld [vmem:[#allocation7 + $0x80] sm:$0xff]
    %v1076 = vld [vmem:[#allocation7 + $0x88] sm:$0xff]
    %v1077 = vld [vmem:[#allocation7 + $0x90] sm:$0xff]
    %v1079 = vsel %vm294, %v1073, 0
    %1081 = vmatprep.subr.mxu0 0.0
    %1082 = vmatpush1.msra.mxu0 0.0
    %1083 = vmatprep.subr.mxu0 0.0
    %1084 = vmatpush1.msra.mxu0 0.0
    %1085 = vmatprep.subr.mxu0 0.0
    %1086 = vmatpush1.msra.mxu0 0.0
    %1087 = vmatprep.subr.mxu0 0.0
    %1088 = vmatpush1.msra.mxu0 0.0
    %1089 = vmatprep.subr.mxu0 0.0
    %1090 = vmatpush1.msra.mxu0 0.0
    %1091 = vmatprep.subr.mxu0 0.0
    %1092 = vmatpush1.msra.mxu0 0.0
    %1093 = vmatprep.subr.mxu0 0.0
    %1094 = vmatpush1.msra.mxu0 0.0
    %1095 = vmatprep.subr.mxu0 0.0
    %1096 = vmatpush1.msra.mxu0 0.0
    %1097 = vmatprep.subr.mxu0 0.0
    %1098 = vmatpush1.msra.mxu0 0.0
    %1099 = vmatprep.subr.mxu0 0.0
    %1100 = vmatpush1.msra.mxu0 0.0
    %1101 = vmatprep.subr.mxu0 0.0
    %1102 = vmatpush1.msra.mxu0 0.0
    %1103 = vmatprep.subr.mxu0 0.0
    %1104 = vmatpush1.msra.mxu0 0.0
    %1105 = vmatprep.subr.mxu0 0.0
    %1106 = vmatpush1.msra.mxu0 %v1077
    %1107 = vmatprep.subr.mxu0 0.0
    %1108 = vmatpush1.msra.mxu0 %v1076
    %1109 = vmatprep.subr.mxu0 0.0
    %1110 = vmatpush1.msra.mxu0 %v1075
    %1111 = vmatprep.subr.mxu0 0.0
    %1112 = vmatpush1.msra.mxu0 %v1074
    %1113 = vmatprep.subr.mxu0 0.0
    %1114 = vmatpush2.msra.mxu0 0.0
    %1115 = vmatprep.subr.mxu0 0.0
    %1116 = vmatpush2.msra.mxu0 0.0
    %1117 = vmatprep.subr.mxu0 0.0
    %1118 = vmatpush2.msra.mxu0 0.0
    %1119 = vmatprep.subr.mxu0 0.0
    %1120 = vmatpush2.msra.mxu0 0.0
    %1121 = vmatprep.subr.mxu0 0.0
    %1122 = vmatpush2.msra.mxu0 0.0
    %1123 = vmatprep.subr.mxu0 0.0
    %1124 = vmatpush2.msra.mxu0 0.0
    %1125 = vmatprep.subr.mxu0 0.0
    %1126 = vmatpush2.msra.mxu0 0.0
    %1127 = vmatprep.subr.mxu0 0.0
    %1128 = vmatpush2.msra.mxu0 0.0
    %1129 = vmatprep.subr.mxu0 0.0
    %1130 = vmatpush2.msra.mxu0 0.0
    %1131 = vmatprep.subr.mxu0 0.0
    %1132 = vmatpush2.msra.mxu0 0.0
    %1133 = vmatprep.subr.mxu0 0.0
    %1134 = vmatpush2.msra.mxu0 0.0
    %1135 = vmatprep.subr.mxu0 0.0
    %1136 = vmatpush2.msra.mxu0 0.0
    %1137 = vmatprep.subr.mxu0 0.0
    %1138 = vmatpush2.msra.mxu0 0.0
    %1139 = vmatprep.subr.mxu0 0.0
    %1140 = vmatpush2.msra.mxu0 0.0
    %1141 = vmatprep.subr.mxu0 0.0
    %1142 = vmatpush2.msra.mxu0 0.0
    %1143 = vmatprep.subr.mxu0 0.0
    %1144 = vmatpush2.msra.mxu0 0.0
    %1145 = vmatprep.mubr.f32.mxu0 0.0
    %1146 = vmatmul.mubr.f32.gmra.mxu0 %v1079
    %v1147 = vpop.f32.mrf.mxu0
    %v1148 = vadd.f32 0.0, %v1147
    %v1149 = vpop.f32.mrf.mxu0
    %1150 = vdwg.mxu0
    %v1151 = vlaneseq
    %v1152 = vshrl.u32 %v1151, 7
    %v1153 = vsub.s32 0, %v1152
    %v1154 = vrot.slane %v1148, %v1153
    %1155 = vst [vmem:[%s3] sm:$0xff] %v1154
    %v1156 = vlaneseq
    %v1157 = vshrl.u32 %v1156, 7
    %v1158 = vsub.s32 1, %v1157
    %v1159 = vrot.slane %v1148, %v1158
    %1160 = vst [vmem:[%s3 + $0x8] sm:$0xff] %v1159
    // Predicated region
    $region26: #{forward_pallas.1} parent=1 // pred_check
      _
    $region27: #{forward_pallas.1} parent=1 // pred_check_branch
      %1162 = sbr.rel (0) target = $region29
    $region28: #{forward_pallas.1} parent=1 // pred_region
      _
    $region29: #{forward_pallas.1} parent=1 // pred_fallthru
      _
    // Predicated region
    $region30: #{forward_pallas.1} parent=1 // pred_check
      _
    $region31: #{forward_pallas.1} parent=1 // pred_check_branch
      %1164 = sbr.rel (0) target = $region33
    $region32: #{forward_pallas.1} parent=1 // pred_region
      _
    $region33: #{forward_pallas.1} parent=1 // pred_fallthru
      _
    %1165 = vsyncpa [#allocation3], 1
    %1166 = vsyncpa [#allocation4], 1
    %1167 = vsyncpa [#allocation6], 1

</llo_original>
